<compile_context>
chip_gen: v7x
topology: tpu7x:2x2x1
jax: 0.10.0
libtpu: 0.0.40
codegen_flags: <defaults>
</compile_context>

<pallas_src>
from functools import partial

import numpy as np
import jax
import jax.numpy as jnp
from jax.experimental import pallas as pl
from jax.experimental.pallas import tpu as pltpu

SELU_ALPHA = 1.6732632423543772
SELU_SCALE = 1.0507009873554805
LANE = 128
OUT_DIM = 2            # fc5 output width
OUT_PAD = 8            # narrow, full-array-dim padded output width


def _selu(x):
    # torch.nn.SELU semantics; clamp the arg of exp so the unselected branch
    # never produces inf (results identical, debug checks stay clean).
    neg = SELU_ALPHA * (jnp.exp(jnp.minimum(x, 0.0)) - 1.0)
    return SELU_SCALE * jnp.where(x > 0, x, neg)


def _round_up(n, m):
    return ((n + m - 1) // m) * m


def _vmem_cap_bytes():
    """Generation-dependent VMEM cap (leave 25% headroom of physical)."""
    try:
        cap = pltpu.get_tpu_info().vmem_capacity_bytes
        return int(cap * 3 // 4)
    except Exception:
        return 48 << 20   # safe on every generation (v7x has 64 MiB physical)


# --------------------------------------------------------------------------
# Kernel: one batch tile per grid step, all weights VMEM-resident.
# Weights are bf16; all dots accumulate in f32; SELU math in f32.
# --------------------------------------------------------------------------
def resnet_kernel(x_ref, w1t_ref, b1_ref, w2t_ref, w3t_ref,
                  w4at_ref, w4bt_ref, w5t_ref, b5_ref, o_ref):
    x = x_ref[...]                                                      # (TB, D) bf16

    h1 = _selu(jnp.dot(x, w1t_ref[...],
                       preferred_element_type=jnp.float32) + b1_ref[...])   # (TB, 6Dp) f32
    h2 = _selu(jnp.dot(h1.astype(jnp.bfloat16), w2t_ref[...],
                       preferred_element_type=jnp.float32))                 # (TB, 3Dp)
    h3 = jnp.dot(h2.astype(jnp.bfloat16), w3t_ref[...],
                 preferred_element_type=jnp.float32)                        # (TB, 2Dp)

    # SELU(cat([h3, x], 1)) @ W4^T  ==  SELU(h3) @ W4a^T + SELU(x) @ W4b^T
    s3 = _selu(h3).astype(jnp.bfloat16)
    sx = _selu(x.astype(jnp.float32)).astype(jnp.bfloat16)
    h4 = _selu(jnp.dot(s3, w4at_ref[...], preferred_element_type=jnp.float32)
               + jnp.dot(sx, w4bt_ref[...], preferred_element_type=jnp.float32))  # (TB, Dp)

    out = jnp.dot(h4.astype(jnp.bfloat16), w5t_ref[...],
                  preferred_element_type=jnp.float32) + b5_ref[...]         # (TB, OUT_PAD)
    o_ref[...] = out.astype(o_ref.dtype)


# --------------------------------------------------------------------------
# Parameters
# --------------------------------------------------------------------------
def init_params(key, input_dim):
    """Deterministic init mimicking nn.Linear default (U[-1/sqrt(fan_in), +])."""
    D = input_dim

    def linear(k, fan_in, fan_out, bias):
        kw, kb = jax.random.split(k)
        bound = 1.0 / np.sqrt(fan_in)
        W = jax.random.uniform(kw, (fan_out, fan_in), jnp.float32, -bound, bound)
        b = (jax.random.uniform(kb, (fan_out,), jnp.float32, -bound, bound)
             if bias else None)
        return W, b

    k1, k2, k3, k4, k5 = jax.random.split(key, 5)
    W1, b1 = linear(k1, D, 6 * D, bias=True)
    W2, _ = linear(k2, 6 * D, 3 * D, bias=False)
    W3, _ = linear(k3, 3 * D, 2 * D, bias=False)
    W4, _ = linear(k4, 3 * D, 1 * D, bias=False)   # in = 2D + D (concat)
    W5, b5 = linear(k5, D, 2, bias=True)
    return dict(W1=W1, b1=b1, W2=W2, W3=W3, W4=W4, W5=W5, b5=b5)


def prepare_params(params, input_dim, weight_dtype=jnp.bfloat16):
    """One-time prep (off the per-call path): transpose weights to (in, out),
    split W4 at the concat boundary, zero-pad hidden feature dims to multiples
    of 128 (exact: SELU(0)=0 and zero weight rows/cols keep padded lanes 0).
    K dims that equal the real input width D stay unpadded (full-dim blocks).
    Weights are stored bf16; biases stay f32."""
    D = input_dim
    Dp = _round_up(D, LANE)
    D6p = _round_up(6 * D, LANE)
    D3p = _round_up(3 * D, LANE)
    D2p = _round_up(2 * D, LANE)

    def pad_t(W, rows, cols):
        Wt = jnp.asarray(W, jnp.float32).T          # (in, out)
        Wt = jnp.pad(Wt, ((0, rows - Wt.shape[0]), (0, cols - Wt.shape[1])))
        return Wt.astype(weight_dtype)

    def pad_b(b, cols):
        b = jnp.asarray(b, jnp.float32)
        return jnp.pad(b, (0, cols - b.shape[0])).reshape(1, cols)   # f32

    W1, b1 = params["W1"], params["b1"]
    W2, W3, W4 = params["W2"], params["W3"], params["W4"]
    W5, b5 = params["W5"], params["b5"]

    return dict(
        w1t=pad_t(W1, D, D6p),                   # (D,   6Dp)
        b1=pad_b(b1, D6p),                       # (1,   6Dp) f32
        w2t=pad_t(W2, D6p, D3p),                 # (6Dp, 3Dp)
        w3t=pad_t(W3, D3p, D2p),                 # (3Dp, 2Dp)
        w4at=pad_t(W4[:, :2 * D], D2p, Dp),      # (2Dp, Dp)  acts on h3 part
        w4bt=pad_t(W4[:, 2 * D:], D, Dp),        # (D,   Dp)  acts on x (skip)
        w5t=pad_t(W5, Dp, OUT_PAD),              # (Dp,  8)
        b5=pad_b(b5, OUT_PAD),                   # (1,   8) f32
    )


# --------------------------------------------------------------------------
# Wrapper (jitted so the conditional pad / final slice fuse around the call)
# --------------------------------------------------------------------------
@partial(jax.jit, static_argnames=("batch_tile",))
def resnet_forward(x, prepped, *, batch_tile=512):
    B, D = x.shape
    D6p = prepped["w1t"].shape[1]
    D3p = prepped["w2t"].shape[1]
    D2p = prepped["w3t"].shape[1]
    Dp = prepped["w4at"].shape[1]

    # Batch tile: multiple of 8, up to `batch_tile`.  Cap so the parallel grid
    # axis has >=2 steps whenever B allows, so v7x's two TensorCores both get
    # work (near-free on single-TC v5e/v6e: one extra ~0.35us grid step).
    B8 = _round_up(B, 8)
    TB = min(batch_tile, B8)
    if B8 >= 16:
        TB = min(TB, max(8, (B8 // 2) // 8 * 8))
    B_pad = _round_up(B, TB)

    x_bf = x.astype(jnp.bfloat16)
    if B_pad != B:
        # Only pad the (rare) ragged batch; feature dim stays unpadded.
        x_bf = jnp.pad(x_bf, ((0, B_pad - B), (0, 0)))
    grid = (B_pad // TB,)

    const = lambda i: (0, 0)     # weights: same block every step -> VMEM-resident
    in_specs = [
        pl.BlockSpec((TB, D), lambda i: (i, 0)),     # x: pipelined over batch
        pl.BlockSpec((D, D6p), const),               # w1t
        pl.BlockSpec((1, D6p), const),               # b1
        pl.BlockSpec((D6p, D3p), const),             # w2t
        pl.BlockSpec((D3p, D2p), const),             # w3t
        pl.BlockSpec((D2p, Dp), const),              # w4at
        pl.BlockSpec((D, Dp), const),                # w4bt
        pl.BlockSpec((Dp, OUT_PAD), const),          # w5t
        pl.BlockSpec((1, OUT_PAD), const),           # b5
    ]
    out_spec = pl.BlockSpec((TB, OUT_PAD), lambda i: (i, 0))

    # Cost hint for the XLA scheduler.
    matmul_elems = (D * D6p + D6p * D3p + D3p * D2p + D2p * Dp + D * Dp
                    + Dp * OUT_PAD)
    weight_bytes = 2 * matmul_elems + 4 * (D6p + OUT_PAD)
    flops = 2 * B_pad * matmul_elems
    transcendentals = B_pad * (D6p + D3p + D2p + D + Dp)
    bytes_accessed = weight_bytes + 2 * B_pad * D + 4 * B_pad * OUT_PAD
    cost = pl.CostEstimate(flops=flops, transcendentals=transcendentals,
                           bytes_accessed=bytes_accessed)

    # VMEM budget: Pallas double-buffers every input by default, so count the
    # resident weights twice; plus double-buffered x/out tiles and the live
    # f32 intermediates.  2x headroom, capped per-generation.
    io_bytes = 2 * TB * (2 * D + 4 * OUT_PAD)                 # x(bf16)+out(f32) x2 bufs
    live_bytes = 4 * TB * (D6p + D3p + D2p + 2 * Dp + D + OUT_PAD)
    vmem_need = 2 * weight_bytes + 2 * io_bytes + live_bytes
    vmem_limit = int(min(max(2 * vmem_need, 16 << 20), _vmem_cap_bytes()))

    out = pl.pallas_call(
        resnet_kernel,
        out_shape=jax.ShapeDtypeStruct((B_pad, OUT_PAD), jnp.float32),
        grid=grid,
        in_specs=in_specs,
        out_specs=out_spec,
        compiler_params=pltpu.CompilerParams(
            dimension_semantics=("parallel",),   # v7x: 2 TCs split the batch tiles
            vmem_limit_bytes=vmem_limit),
        cost_estimate=cost,
    )(x_bf, prepped["w1t"], prepped["b1"], prepped["w2t"], prepped["w3t"],
      prepped["w4at"], prepped["w4bt"], prepped["w5t"], prepped["b5"])

    # drop batch/lane padding, then torch `.squeeze()` on the (B, 2) result
    return jnp.squeeze(out[:B, :OUT_DIM])


def resnet_reference(x, params):
    """Plain-JAX f32 reference of the effective PyTorch forward."""
    W1, b1 = params["W1"], params["b1"]
    W2, W3, W4 = params["W2"], params["W3"], params["W4"]
    W5, b5 = params["W5"], params["b5"]
    h1 = _selu(x @ W1.T + b1)
    h2 = _selu(h1 @ W2.T)
    h3 = h2 @ W3.T
    h3c = _selu(jnp.concatenate([h3, x], axis=1))
    h4 = _selu(h3c @ W4.T)
    out = h4 @ W5.T + b5
    return jnp.squeeze(out)


if __name__ == "__main__":
    key = jax.random.PRNGKey(0)
    k_param, k_x = jax.random.split(key)

    B, D = 256, 32                      # -> 2 batch tiles of 128 (exercises the grid)
    params = init_params(k_param, D)
    prepped = prepare_params(params, D)          # one-time weight prep (off hot path)
    x = jax.random.normal(k_x, (B, D), jnp.float32)

    y = jax.block_until_ready(resnet_forward(x, prepped))
    y_ref = jax.block_until_ready(resnet_reference(x, params))

    assert y.shape == (B, OUT_DIM), y.shape
    # bf16 matmul operands (f32 accumulation) -> validate at looser tolerance.
    np.testing.assert_allclose(np.asarray(y), np.asarray(y_ref),
                               rtol=5e-2, atol=5e-2)
    print("KERNEL_OK")
</pallas_src>

<mosaic_0001>
module attributes {stable_mosaic.version = 11 : i64} {
  func.func @resnet_kernel(%arg0: i32, %arg1: memref<128x32xbf16, #tpu.memory_space<vmem>>, %arg2: memref<32x256xbf16, #tpu.memory_space<vmem>>, %arg3: memref<1x256xf32, #tpu.memory_space<vmem>>, %arg4: memref<256x128xbf16, #tpu.memory_space<vmem>>, %arg5: memref<128x128xbf16, #tpu.memory_space<vmem>>, %arg6: memref<128x128xbf16, #tpu.memory_space<vmem>>, %arg7: memref<32x128xbf16, #tpu.memory_space<vmem>>, %arg8: memref<128x8xbf16, #tpu.memory_space<vmem>>, %arg9: memref<1x8xf32, #tpu.memory_space<vmem>>, %arg10: memref<128x8xf32, #tpu.memory_space<vmem>>) attributes {dimension_semantics = [#tpu.dimension_semantics<parallel>], iteration_bounds = array<i64: 2>, scalar_prefetch = 0 : i64, scratch_operands = 0 : i64, tpu.core_type = #tpu.core_type<tc>, window_params = [{transform_indices = @transform_0, window_bounds = array<i64: 128, 32>}, {pipeline_mode = #tpu.pipeline_mode<synchronous>, transform_indices = @transform_1, window_bounds = array<i64: 32, 256>}, {pipeline_mode = #tpu.pipeline_mode<synchronous>, transform_indices = @transform_2, window_bounds = array<i64: 1, 256>}, {pipeline_mode = #tpu.pipeline_mode<synchronous>, transform_indices = @transform_3, window_bounds = array<i64: 256, 128>}, {pipeline_mode = #tpu.pipeline_mode<synchronous>, transform_indices = @transform_4, window_bounds = array<i64: 128, 128>}, {pipeline_mode = #tpu.pipeline_mode<synchronous>, transform_indices = @transform_5, window_bounds = array<i64: 128, 128>}, {pipeline_mode = #tpu.pipeline_mode<synchronous>, transform_indices = @transform_6, window_bounds = array<i64: 32, 128>}, {pipeline_mode = #tpu.pipeline_mode<synchronous>, transform_indices = @transform_7, window_bounds = array<i64: 128, 8>}, {pipeline_mode = #tpu.pipeline_mode<synchronous>, transform_indices = @transform_8, window_bounds = array<i64: 1, 8>}, {transform_indices = @transform_9, window_bounds = array<i64: 128, 8>}]} {
    %c0 = arith.constant 0 : index
    %c0_0 = arith.constant 0 : index
    %0 = vector.load %arg1[%c0, %c0_0] : memref<128x32xbf16, #tpu.memory_space<vmem>>, vector<128x32xbf16>
    %c0_1 = arith.constant 0 : index
    %c0_2 = arith.constant 0 : index
    %1 = vector.load %arg2[%c0_1, %c0_2] : memref<32x256xbf16, #tpu.memory_space<vmem>>, vector<32x256xbf16>
    %cst = arith.constant dense<0.000000e+00> : vector<128x256xf32>
    %2 = tpu.matmul %0, %1, %cst {dimension_numbers = #tpu.dot_dimension_numbers<[1], [0], [0], [1], [0, 0, 1, 1], [], []>} : vector<128x32xbf16>, vector<32x256xbf16>, vector<128x256xf32> -> vector<128x256xf32>
    %c0_3 = arith.constant 0 : index
    %c0_4 = arith.constant 0 : index
    %3 = vector.load %arg3[%c0_3, %c0_4] : memref<1x256xf32, #tpu.memory_space<vmem>>, vector<1x256xf32>
    %4 = vector.broadcast %3 : vector<1x256xf32> to vector<128x256xf32>
    %5 = arith.addf %2, %4 : vector<128x256xf32>
    %cst_5 = arith.constant 0.000000e+00 : f32
    %6 = vector.broadcast %cst_5 : f32 to vector<128x256xf32>
    %7 = arith.minimumf %5, %6 : vector<128x256xf32>
    %8 = math.exp %7 : vector<128x256xf32>
    %cst_6 = arith.constant 1.000000e+00 : f32
    %9 = vector.broadcast %cst_6 : f32 to vector<128x256xf32>
    %10 = arith.subf %8, %9 : vector<128x256xf32>
    %cst_7 = arith.constant 1.67326319 : f32
    %11 = vector.broadcast %cst_7 : f32 to vector<128x256xf32>
    %12 = arith.mulf %11, %10 : vector<128x256xf32>
    %cst_8 = arith.constant 0.000000e+00 : f32
    %13 = vector.broadcast %cst_8 : f32 to vector<128x256xf32>
    %14 = arith.cmpf ogt, %5, %13 : vector<128x256xf32>
    %15 = arith.select %14, %5, %12 : vector<128x256xi1>, vector<128x256xf32>
    %cst_9 = arith.constant 1.05070102 : f32
    %16 = vector.broadcast %cst_9 : f32 to vector<128x256xf32>
    %17 = arith.mulf %16, %15 : vector<128x256xf32>
    %18 = arith.truncf %17 : vector<128x256xf32> to vector<128x256xbf16>
    %c0_10 = arith.constant 0 : index
    %c0_11 = arith.constant 0 : index
    %19 = vector.load %arg4[%c0_10, %c0_11] : memref<256x128xbf16, #tpu.memory_space<vmem>>, vector<256x128xbf16>
    %cst_12 = arith.constant dense<0.000000e+00> : vector<128x128xf32>
    %20 = tpu.matmul %18, %19, %cst_12 {dimension_numbers = #tpu.dot_dimension_numbers<[1], [0], [0], [1], [0, 0, 1, 1], [], []>} : vector<128x256xbf16>, vector<256x128xbf16>, vector<128x128xf32> -> vector<128x128xf32>
    %cst_13 = arith.constant 0.000000e+00 : f32
    %21 = vector.broadcast %cst_13 : f32 to vector<128x128xf32>
    %22 = arith.minimumf %20, %21 : vector<128x128xf32>
    %23 = math.exp %22 : vector<128x128xf32>
    %cst_14 = arith.constant 1.000000e+00 : f32
    %24 = vector.broadcast %cst_14 : f32 to vector<128x128xf32>
    %25 = arith.subf %23, %24 : vector<128x128xf32>
    %cst_15 = arith.constant 1.67326319 : f32
    %26 = vector.broadcast %cst_15 : f32 to vector<128x128xf32>
    %27 = arith.mulf %26, %25 : vector<128x128xf32>
    %cst_16 = arith.constant 0.000000e+00 : f32
    %28 = vector.broadcast %cst_16 : f32 to vector<128x128xf32>
    %29 = arith.cmpf ogt, %20, %28 : vector<128x128xf32>
    %30 = arith.select %29, %20, %27 : vector<128x128xi1>, vector<128x128xf32>
    %cst_17 = arith.constant 1.05070102 : f32
    %31 = vector.broadcast %cst_17 : f32 to vector<128x128xf32>
    %32 = arith.mulf %31, %30 : vector<128x128xf32>
    %33 = arith.truncf %32 : vector<128x128xf32> to vector<128x128xbf16>
    %c0_18 = arith.constant 0 : index
    %c0_19 = arith.constant 0 : index
    %34 = vector.load %arg5[%c0_18, %c0_19] : memref<128x128xbf16, #tpu.memory_space<vmem>>, vector<128x128xbf16>
    %cst_20 = arith.constant dense<0.000000e+00> : vector<128x128xf32>
    %35 = tpu.matmul %33, %34, %cst_20 {dimension_numbers = #tpu.dot_dimension_numbers<[1], [0], [0], [1], [0, 0, 1, 1], [], []>} : vector<128x128xbf16>, vector<128x128xbf16>, vector<128x128xf32> -> vector<128x128xf32>
    %cst_21 = arith.constant 0.000000e+00 : f32
    %36 = vector.broadcast %cst_21 : f32 to vector<128x128xf32>
    %37 = arith.minimumf %35, %36 : vector<128x128xf32>
    %38 = math.exp %37 : vector<128x128xf32>
    %cst_22 = arith.constant 1.000000e+00 : f32
    %39 = vector.broadcast %cst_22 : f32 to vector<128x128xf32>
    %40 = arith.subf %38, %39 : vector<128x128xf32>
    %cst_23 = arith.constant 1.67326319 : f32
    %41 = vector.broadcast %cst_23 : f32 to vector<128x128xf32>
    %42 = arith.mulf %41, %40 : vector<128x128xf32>
    %cst_24 = arith.constant 0.000000e+00 : f32
    %43 = vector.broadcast %cst_24 : f32 to vector<128x128xf32>
    %44 = arith.cmpf ogt, %35, %43 : vector<128x128xf32>
    %45 = arith.select %44, %35, %42 : vector<128x128xi1>, vector<128x128xf32>
    %cst_25 = arith.constant 1.05070102 : f32
    %46 = vector.broadcast %cst_25 : f32 to vector<128x128xf32>
    %47 = arith.mulf %46, %45 : vector<128x128xf32>
    %48 = arith.truncf %47 : vector<128x128xf32> to vector<128x128xbf16>
    %49 = arith.extf %0 : vector<128x32xbf16> to vector<128x32xf32>
    %cst_26 = arith.constant 0.000000e+00 : f32
    %50 = vector.broadcast %cst_26 : f32 to vector<128x32xf32>
    %51 = arith.minimumf %49, %50 : vector<128x32xf32>
    %52 = math.exp %51 : vector<128x32xf32>
    %cst_27 = arith.constant 1.000000e+00 : f32
    %53 = vector.broadcast %cst_27 : f32 to vector<128x32xf32>
    %54 = arith.subf %52, %53 : vector<128x32xf32>
    %cst_28 = arith.constant 1.67326319 : f32
    %55 = vector.broadcast %cst_28 : f32 to vector<128x32xf32>
    %56 = arith.mulf %55, %54 : vector<128x32xf32>
    %cst_29 = arith.constant 0.000000e+00 : f32
    %57 = vector.broadcast %cst_29 : f32 to vector<128x32xf32>
    %58 = arith.cmpf ogt, %49, %57 : vector<128x32xf32>
    %59 = arith.select %58, %49, %56 : vector<128x32xi1>, vector<128x32xf32>
    %cst_30 = arith.constant 1.05070102 : f32
    %60 = vector.broadcast %cst_30 : f32 to vector<128x32xf32>
    %61 = arith.mulf %60, %59 : vector<128x32xf32>
    %62 = arith.truncf %61 : vector<128x32xf32> to vector<128x32xbf16>
    %c0_31 = arith.constant 0 : index
    %c0_32 = arith.constant 0 : index
    %63 = vector.load %arg6[%c0_31, %c0_32] : memref<128x128xbf16, #tpu.memory_space<vmem>>, vector<128x128xbf16>
    %cst_33 = arith.constant dense<0.000000e+00> : vector<128x128xf32>
    %64 = tpu.matmul %48, %63, %cst_33 {dimension_numbers = #tpu.dot_dimension_numbers<[1], [0], [0], [1], [0, 0, 1, 1], [], []>} : vector<128x128xbf16>, vector<128x128xbf16>, vector<128x128xf32> -> vector<128x128xf32>
    %c0_34 = arith.constant 0 : index
    %c0_35 = arith.constant 0 : index
    %65 = vector.load %arg7[%c0_34, %c0_35] : memref<32x128xbf16, #tpu.memory_space<vmem>>, vector<32x128xbf16>
    %cst_36 = arith.constant dense<0.000000e+00> : vector<128x128xf32>
    %66 = tpu.matmul %62, %65, %cst_36 {dimension_numbers = #tpu.dot_dimension_numbers<[1], [0], [0], [1], [0, 0, 1, 1], [], []>} : vector<128x32xbf16>, vector<32x128xbf16>, vector<128x128xf32> -> vector<128x128xf32>
    %67 = arith.addf %64, %66 : vector<128x128xf32>
    %cst_37 = arith.constant 0.000000e+00 : f32
    %68 = vector.broadcast %cst_37 : f32 to vector<128x128xf32>
    %69 = arith.minimumf %67, %68 : vector<128x128xf32>
    %70 = math.exp %69 : vector<128x128xf32>
    %cst_38 = arith.constant 1.000000e+00 : f32
    %71 = vector.broadcast %cst_38 : f32 to vector<128x128xf32>
    %72 = arith.subf %70, %71 : vector<128x128xf32>
    %cst_39 = arith.constant 1.67326319 : f32
    %73 = vector.broadcast %cst_39 : f32 to vector<128x128xf32>
    %74 = arith.mulf %73, %72 : vector<128x128xf32>
    %cst_40 = arith.constant 0.000000e+00 : f32
    %75 = vector.broadcast %cst_40 : f32 to vector<128x128xf32>
    %76 = arith.cmpf ogt, %67, %75 : vector<128x128xf32>
    %77 = arith.select %76, %67, %74 : vector<128x128xi1>, vector<128x128xf32>
    %cst_41 = arith.constant 1.05070102 : f32
    %78 = vector.broadcast %cst_41 : f32 to vector<128x128xf32>
    %79 = arith.mulf %78, %77 : vector<128x128xf32>
    %80 = arith.truncf %79 : vector<128x128xf32> to vector<128x128xbf16>
    %c0_42 = arith.constant 0 : index
    %c0_43 = arith.constant 0 : index
    %81 = vector.load %arg8[%c0_42, %c0_43] : memref<128x8xbf16, #tpu.memory_space<vmem>>, vector<128x8xbf16>
    %cst_44 = arith.constant dense<0.000000e+00> : vector<128x8xf32>
    %82 = tpu.matmul %80, %81, %cst_44 {dimension_numbers = #tpu.dot_dimension_numbers<[1], [0], [0], [1], [0, 0, 1, 1], [], []>} : vector<128x128xbf16>, vector<128x8xbf16>, vector<128x8xf32> -> vector<128x8xf32>
    %c0_45 = arith.constant 0 : index
    %c0_46 = arith.constant 0 : index
    %83 = vector.load %arg9[%c0_45, %c0_46] : memref<1x8xf32, #tpu.memory_space<vmem>>, vector<1x8xf32>
    %84 = vector.broadcast %83 : vector<1x8xf32> to vector<128x8xf32>
    %85 = arith.addf %82, %84 : vector<128x8xf32>
    %c0_47 = arith.constant 0 : index
    %c0_48 = arith.constant 0 : index
    %86 = vector.load %arg10[%c0_47, %c0_48] : memref<128x8xf32, #tpu.memory_space<vmem>>, vector<128x8xf32>
    tpu.vector_store %arg10[%c0_47, %c0_48], %85 {strides = array<i32>} : memref<128x8xf32, #tpu.memory_space<vmem>>, vector<128x8xf32>,
    return
  }
  func.func @transform_0(%arg0: i32) -> (i32, i32) {
    %c0_i32 = arith.constant 0 : i32
    %c0_i32_0 = arith.constant 0 : i32
    return %arg0, %c0_i32 : i32, i32
  }
  func.func @transform_1(%arg0: i32) -> (i32, i32) {
    %c0_i32 = arith.constant 0 : i32
    %c0_i32_0 = arith.constant 0 : i32
    %c0_i32_1 = arith.constant 0 : i32
    return %c0_i32, %c0_i32_0 : i32, i32
  }
  func.func @transform_2(%arg0: i32) -> (i32, i32) {
    %c0_i32 = arith.constant 0 : i32
    %c0_i32_0 = arith.constant 0 : i32
    %c0_i32_1 = arith.constant 0 : i32
    return %c0_i32, %c0_i32_0 : i32, i32
  }
  func.func @transform_3(%arg0: i32) -> (i32, i32) {
    %c0_i32 = arith.constant 0 : i32
    %c0_i32_0 = arith.constant 0 : i32
    %c0_i32_1 = arith.constant 0 : i32
    return %c0_i32, %c0_i32_0 : i32, i32
  }
  func.func @transform_4(%arg0: i32) -> (i32, i32) {
    %c0_i32 = arith.constant 0 : i32
    %c0_i32_0 = arith.constant 0 : i32
    %c0_i32_1 = arith.constant 0 : i32
    return %c0_i32, %c0_i32_0 : i32, i32
  }
  func.func @transform_5(%arg0: i32) -> (i32, i32) {
    %c0_i32 = arith.constant 0 : i32
    %c0_i32_0 = arith.constant 0 : i32
    %c0_i32_1 = arith.constant 0 : i32
    return %c0_i32, %c0_i32_0 : i32, i32
  }
  func.func @transform_6(%arg0: i32) -> (i32, i32) {
    %c0_i32 = arith.constant 0 : i32
    %c0_i32_0 = arith.constant 0 : i32
    %c0_i32_1 = arith.constant 0 : i32
    return %c0_i32, %c0_i32_0 : i32, i32
  }
  func.func @transform_7(%arg0: i32) -> (i32, i32) {
    %c0_i32 = arith.constant 0 : i32
    %c0_i32_0 = arith.constant 0 : i32
    %c0_i32_1 = arith.constant 0 : i32
    return %c0_i32, %c0_i32_0 : i32, i32
  }
  func.func @transform_8(%arg0: i32) -> (i32, i32) {
    %c0_i32 = arith.constant 0 : i32
    %c0_i32_0 = arith.constant 0 : i32
    %c0_i32_1 = arith.constant 0 : i32
    return %c0_i32, %c0_i32_0 : i32, i32
  }
  func.func @transform_9(%arg0: i32) -> (i32, i32) {
    %c0_i32 = arith.constant 0 : i32
    %c0_i32_0 = arith.constant 0 : i32
    return %arg0, %c0_i32 : i32, i32
  }
}

</mosaic_0001>

<llo_original>
// kernel: resnet_forward.1
$region0: #{resnet_forward.1}
  #allocation0 [shape = 'u32[]', space=smem, size = 0x4, offset = 0x4, fixed_abs, tag = 'smem constant byte address 0x4 - core index']
  #allocation1 [shape = 'u32[144,128]{1,0:T(1,128)}', space=vmem, size = 0x12000, scoped, tag = 'internal scratch']
  %s0 = inlined_call_operand.vmem [shape: bf16[256,32], index: 0, kind: input, shape index: {}]
  %s1 = inlined_call_operand.vmem [shape: bf16[32,256], index: 1, kind: input, shape index: {}]
  %s2 = inlined_call_operand.vmem [shape: f32[1,256], index: 2, kind: input, shape index: {}]
  %s3 = inlined_call_operand.vmem [shape: bf16[256,128], index: 3, kind: input, shape index: {}]
  %s4 = inlined_call_operand.vmem [shape: bf16[128,128], index: 4, kind: input, shape index: {}]
  %s5 = inlined_call_operand.vmem [shape: bf16[128,128], index: 5, kind: input, shape index: {}]
  %s6 = inlined_call_operand.vmem [shape: bf16[32,128], index: 6, kind: input, shape index: {}]
  %s7 = inlined_call_operand.vmem [shape: bf16[128,8], index: 7, kind: input, shape index: {}]
  %s8 = inlined_call_operand.vmem [shape: f32[1,8], index: 8, kind: input, shape index: {}]
  %s9 = inlined_call_operand.vmem [shape: f32[256,8], index: 9, kind: output, shape index: {}]
  %s10 = sld [smem:[#allocation0]]
  $region69: #{resnet_forward.1} parent=0
    _
  %s12 = ssub.s32 1, %s10
  %s13 = scalar_select 0, %s12, %s10
  loop: start=0, step=1, limit=4
  $region2: #{resnet_forward.1} parent=0 // loop_pre_header
    _
  $region3: #{resnet_forward.1} parent=0 // loop_header
    %s15 = sphi 0, %s19
    %p16 = scmp.ge.s32.totalorder %s15, 4
    %s25 = sphi 0, %s27
    %s28 = sphi 0, %s25
    %s29 = sphi 0, %s28
    %s45 = sphi 0, %s29
    %s49 = sphi 0, %s49
    %s51 = sphi 0, %s49
    %s52 = sphi 0, %s51
    %s66 = sphi 0, %s52
    %s70 = sphi 0, %s70
    %s72 = sphi 0, %s70
    %s73 = sphi 0, %s72
    %s87 = sphi 0, %s73
    %s91 = sphi 0, %s91
    %s93 = sphi 0, %s91
    %s94 = sphi 0, %s93
    %s108 = sphi 0, %s94
    %s112 = sphi 0, %s112
    %s114 = sphi 0, %s112
    %s115 = sphi 0, %s114
    %s129 = sphi 0, %s115
    %s133 = sphi 0, %s133
    %s135 = sphi 0, %s133
    %s136 = sphi 0, %s135
    %s150 = sphi 0, %s136
    %s154 = sphi 0, %s154
    %s156 = sphi 0, %s154
    %s157 = sphi 0, %s156
    %s171 = sphi 0, %s157
    %s175 = sphi 0, %s175
    %s177 = sphi 0, %s175
    %s178 = sphi 0, %s177
    %s192 = sphi 0, %s178
    %s196 = sphi 0, %s196
    %s198 = sphi 0, %s196
    %s199 = sphi 0, %s198
    %s213 = sphi 0, %s199
    %s219 = sphi 0, %s221
    %s222 = sphi 0, %s219
    %s223 = sphi 0, %s222
    %s239 = sphi 0, %s223
  $region4: #{resnet_forward.1} parent=0 // loop_header_branch
    %18 = sbr.rel (%p16) target = $region8
  $region5: #{resnet_forward.1} parent=0 // loop_body
    %s20 = ssub.s32 %s15, 1
    %s21 = ssub.s32 %s15, 2
    %s22 = sadd.s32 %s15, 1
    %s23 = ssub.s32 %s15, %s22
    %p24 = scmp.eq.s32.totalorder %s23, 0
    %s26 = sadd.s32 %s25, 1
    %s27 = scalar_select %p24, %s25, %s26
    %p30 = pneg %p24
    %p31 = scmp.eq.s32.totalorder %s15, 1
    %p32 = por %p30, %p31
    %p33 = scmp.ne.s32.totalorder %s25, %s28
    %p34 = scmp.eq.s32.totalorder %s15, 0
    %p35 = por %p33, %p34
    %p36 = scmp.ne.s32.totalorder %s25, %s28
    %p37 = scmp.eq.s32.totalorder %s20, 1
    %p38 = por %p36, %p37
    %p39 = scmp.ne.s32.totalorder %s28, %s29
    %p40 = scmp.eq.s32.totalorder %s20, 0
    %p41 = por %p39, %p40
    %p42 = scmp.ne.s32.totalorder %s28, %s29
    %p43 = scmp.eq.s32.totalorder %s21, 1
    %p44 = por %p42, %p43
    %p46 = scmp.ne.s32.totalorder %s29, %s45
    %p47 = scmp.eq.s32.totalorder %s21, 0
    %p48 = por %p46, %p47
    %s50 = sadd.s32 %s49, 1
    %p53 = scmp.eq.s32.totalorder %s15, 1
    %p54 = scmp.ne.s32.totalorder %s49, %s51
    %p55 = scmp.eq.s32.totalorder %s15, 0
    %p56 = por %p54, %p55
    %p57 = scmp.ne.s32.totalorder %s49, %s51
    %p58 = scmp.eq.s32.totalorder %s20, 1
    %p59 = por %p57, %p58
    %p60 = scmp.ne.s32.totalorder %s51, %s52
    %p61 = scmp.eq.s32.totalorder %s20, 0
    %p62 = por %p60, %p61
    %p63 = scmp.ne.s32.totalorder %s51, %s52
    %p64 = scmp.eq.s32.totalorder %s21, 1
    %p65 = por %p63, %p64
    %p67 = scmp.ne.s32.totalorder %s52, %s66
    %p68 = scmp.eq.s32.totalorder %s21, 0
    %p69 = por %p67, %p68
    %s71 = sadd.s32 %s70, 1
    %p74 = scmp.eq.s32.totalorder %s15, 1
    %p75 = scmp.ne.s32.totalorder %s70, %s72
    %p76 = scmp.eq.s32.totalorder %s15, 0
    %p77 = por %p75, %p76
    %p78 = scmp.ne.s32.totalorder %s70, %s72
    %p79 = scmp.eq.s32.totalorder %s20, 1
    %p80 = por %p78, %p79
    %p81 = scmp.ne.s32.totalorder %s72, %s73
    %p82 = scmp.eq.s32.totalorder %s20, 0
    %p83 = por %p81, %p82
    %p84 = scmp.ne.s32.totalorder %s72, %s73
    %p85 = scmp.eq.s32.totalorder %s21, 1
    %p86 = por %p84, %p85
    %p88 = scmp.ne.s32.totalorder %s73, %s87
    %p89 = scmp.eq.s32.totalorder %s21, 0
    %p90 = por %p88, %p89
    %s92 = sadd.s32 %s91, 1
    %p95 = scmp.eq.s32.totalorder %s15, 1
    %p96 = scmp.ne.s32.totalorder %s91, %s93
    %p97 = scmp.eq.s32.totalorder %s15, 0
    %p98 = por %p96, %p97
    %p99 = scmp.ne.s32.totalorder %s91, %s93
    %p100 = scmp.eq.s32.totalorder %s20, 1
    %p101 = por %p99, %p100
    %p102 = scmp.ne.s32.totalorder %s93, %s94
    %p103 = scmp.eq.s32.totalorder %s20, 0
    %p104 = por %p102, %p103
    %p105 = scmp.ne.s32.totalorder %s93, %s94
    %p106 = scmp.eq.s32.totalorder %s21, 1
    %p107 = por %p105, %p106
    %p109 = scmp.ne.s32.totalorder %s94, %s108
    %p110 = scmp.eq.s32.totalorder %s21, 0
    %p111 = por %p109, %p110
    %s113 = sadd.s32 %s112, 1
    %p116 = scmp.eq.s32.totalorder %s15, 1
    %p117 = scmp.ne.s32.totalorder %s112, %s114
    %p118 = scmp.eq.s32.totalorder %s15, 0
    %p119 = por %p117, %p118
    %p120 = scmp.ne.s32.totalorder %s112, %s114
    %p121 = scmp.eq.s32.totalorder %s20, 1
    %p122 = por %p120, %p121
    %p123 = scmp.ne.s32.totalorder %s114, %s115
    %p124 = scmp.eq.s32.totalorder %s20, 0
    %p125 = por %p123, %p124
    %p126 = scmp.ne.s32.totalorder %s114, %s115
    %p127 = scmp.eq.s32.totalorder %s21, 1
    %p128 = por %p126, %p127
    %p130 = scmp.ne.s32.totalorder %s115, %s129
    %p131 = scmp.eq.s32.totalorder %s21, 0
    %p132 = por %p130, %p131
    %s134 = sadd.s32 %s133, 1
    %p137 = scmp.eq.s32.totalorder %s15, 1
    %p138 = scmp.ne.s32.totalorder %s133, %s135
    %p139 = scmp.eq.s32.totalorder %s15, 0
    %p140 = por %p138, %p139
    %p141 = scmp.ne.s32.totalorder %s133, %s135
    %p142 = scmp.eq.s32.totalorder %s20, 1
    %p143 = por %p141, %p142
    %p144 = scmp.ne.s32.totalorder %s135, %s136
    %p145 = scmp.eq.s32.totalorder %s20, 0
    %p146 = por %p144, %p145
    %p147 = scmp.ne.s32.totalorder %s135, %s136
    %p148 = scmp.eq.s32.totalorder %s21, 1
    %p149 = por %p147, %p148
    %p151 = scmp.ne.s32.totalorder %s136, %s150
    %p152 = scmp.eq.s32.totalorder %s21, 0
    %p153 = por %p151, %p152
    %s155 = sadd.s32 %s154, 1
    %p158 = scmp.eq.s32.totalorder %s15, 1
    %p159 = scmp.ne.s32.totalorder %s154, %s156
    %p160 = scmp.eq.s32.totalorder %s15, 0
    %p161 = por %p159, %p160
    %p162 = scmp.ne.s32.totalorder %s154, %s156
    %p163 = scmp.eq.s32.totalorder %s20, 1
    %p164 = por %p162, %p163
    %p165 = scmp.ne.s32.totalorder %s156, %s157
    %p166 = scmp.eq.s32.totalorder %s20, 0
    %p167 = por %p165, %p166
    %p168 = scmp.ne.s32.totalorder %s156, %s157
    %p169 = scmp.eq.s32.totalorder %s21, 1
    %p170 = por %p168, %p169
    %p172 = scmp.ne.s32.totalorder %s157, %s171
    %p173 = scmp.eq.s32.totalorder %s21, 0
    %p174 = por %p172, %p173
    %s176 = sadd.s32 %s175, 1
    %p179 = scmp.eq.s32.totalorder %s15, 1
    %p180 = scmp.ne.s32.totalorder %s175, %s177
    %p181 = scmp.eq.s32.totalorder %s15, 0
    %p182 = por %p180, %p181
    %p183 = scmp.ne.s32.totalorder %s175, %s177
    %p184 = scmp.eq.s32.totalorder %s20, 1
    %p185 = por %p183, %p184
    %p186 = scmp.ne.s32.totalorder %s177, %s178
    %p187 = scmp.eq.s32.totalorder %s20, 0
    %p188 = por %p186, %p187
    %p189 = scmp.ne.s32.totalorder %s177, %s178
    %p190 = scmp.eq.s32.totalorder %s21, 1
    %p191 = por %p189, %p190
    %p193 = scmp.ne.s32.totalorder %s178, %s192
    %p194 = scmp.eq.s32.totalorder %s21, 0
    %p195 = por %p193, %p194
    %s197 = sadd.s32 %s196, 1
    %p200 = scmp.eq.s32.totalorder %s15, 1
    %p201 = scmp.ne.s32.totalorder %s196, %s198
    %p202 = scmp.eq.s32.totalorder %s15, 0
    %p203 = por %p201, %p202
    %p204 = scmp.ne.s32.totalorder %s196, %s198
    %p205 = scmp.eq.s32.totalorder %s20, 1
    %p206 = por %p204, %p205
    %p207 = scmp.ne.s32.totalorder %s198, %s199
    %p208 = scmp.eq.s32.totalorder %s20, 0
    %p209 = por %p207, %p208
    %p210 = scmp.ne.s32.totalorder %s198, %s199
    %p211 = scmp.eq.s32.totalorder %s21, 1
    %p212 = por %p210, %p211
    %p214 = scmp.ne.s32.totalorder %s199, %s213
    %p215 = scmp.eq.s32.totalorder %s21, 0
    %p216 = por %p214, %p215
    %s217 = ssub.s32 %s15, %s22
    %p218 = scmp.eq.s32.totalorder %s217, 0
    %s220 = sadd.s32 %s219, 1
    %s221 = scalar_select %p218, %s219, %s220
    %p224 = pneg %p218
    %p225 = scmp.eq.s32.totalorder %s15, 1
    %p226 = por %p224, %p225
    %p227 = scmp.ne.s32.totalorder %s219, %s222
    %p228 = scmp.eq.s32.totalorder %s15, 0
    %p229 = por %p227, %p228
    %p230 = scmp.ne.s32.totalorder %s219, %s222
    %p231 = scmp.eq.s32.totalorder %s20, 1
    %p232 = por %p230, %p231
    %p233 = scmp.ne.s32.totalorder %s222, %s223
    %p234 = scmp.eq.s32.totalorder %s20, 0
    %p235 = por %p233, %p234
    %p236 = scmp.ne.s32.totalorder %s222, %s223
    %p237 = scmp.eq.s32.totalorder %s21, 1
    %p238 = por %p236, %p237
    %p240 = scmp.ne.s32.totalorder %s223, %s239
    %p241 = scmp.eq.s32.totalorder %s21, 0
    %p242 = por %p240, %p241
    %p243 = scmp.le.s32.totalorder 1, %s15
    %p244 = scmp.lt.s32.totalorder %s15, 3
    %p245 = pnand %p243, %p244
    %p246 = pneg %p245
    // Predicated region
    $region9: #{resnet_forward.1} parent=5 // pred_check
      _
    $region10: #{resnet_forward.1} parent=5 // pred_check_branch
      %248 = sbr.rel (%p245) target = $region12
    $region11: #{resnet_forward.1} parent=5 // pred_region
      %s249 = ssub.s32 %s15, 1
      // Predicated region
      $region13: #{resnet_forward.1} parent=11 // pred_check
        %p250 = pneg %p62
      $region14: #{resnet_forward.1} parent=11 // pred_check_branch
        %252 = sbr.rel (%p250) target = $region16
      $region15: #{resnet_forward.1} parent=11 // pred_region
        _
      $region16: #{resnet_forward.1} parent=11 // pred_fallthru
        _
      // Predicated region
      $region17: #{resnet_forward.1} parent=11 // pred_check
        %p253 = pneg %p83
      $region18: #{resnet_forward.1} parent=11 // pred_check_branch
        %255 = sbr.rel (%p253) target = $region20
      $region19: #{resnet_forward.1} parent=11 // pred_region
        _
      $region20: #{resnet_forward.1} parent=11 // pred_fallthru
        _
      // Predicated region
      $region21: #{resnet_forward.1} parent=11 // pred_check
        %p256 = pneg %p104
      $region22: #{resnet_forward.1} parent=11 // pred_check_branch
        %258 = sbr.rel (%p256) target = $region24
      $region23: #{resnet_forward.1} parent=11 // pred_region
        _
      $region24: #{resnet_forward.1} parent=11 // pred_fallthru
        _
      // Predicated region
      $region25: #{resnet_forward.1} parent=11 // pred_check
        %p259 = pneg %p125
      $region26: #{resnet_forward.1} parent=11 // pred_check_branch
        %261 = sbr.rel (%p259) target = $region28
      $region27: #{resnet_forward.1} parent=11 // pred_region
        _
      $region28: #{resnet_forward.1} parent=11 // pred_fallthru
        _
      // Predicated region
      $region29: #{resnet_forward.1} parent=11 // pred_check
        %p262 = pneg %p146
      $region30: #{resnet_forward.1} parent=11 // pred_check_branch
        %264 = sbr.rel (%p262) target = $region32
      $region31: #{resnet_forward.1} parent=11 // pred_region
        _
      $region32: #{resnet_forward.1} parent=11 // pred_fallthru
        _
      // Predicated region
      $region33: #{resnet_forward.1} parent=11 // pred_check
        %p265 = pneg %p167
      $region34: #{resnet_forward.1} parent=11 // pred_check_branch
        %267 = sbr.rel (%p265) target = $region36
      $region35: #{resnet_forward.1} parent=11 // pred_region
        _
      $region36: #{resnet_forward.1} parent=11 // pred_fallthru
        _
      // Predicated region
      $region37: #{resnet_forward.1} parent=11 // pred_check
        %p268 = pneg %p188
      $region38: #{resnet_forward.1} parent=11 // pred_check_branch
        %270 = sbr.rel (%p268) target = $region40
      $region39: #{resnet_forward.1} parent=11 // pred_region
        _
      $region40: #{resnet_forward.1} parent=11 // pred_fallthru
        _
      // Predicated region
      $region41: #{resnet_forward.1} parent=11 // pred_check
        %p271 = pneg %p209
      $region42: #{resnet_forward.1} parent=11 // pred_check_branch
        %273 = sbr.rel (%p271) target = $region44
      $region43: #{resnet_forward.1} parent=11 // pred_region
        _
      $region44: #{resnet_forward.1} parent=11 // pred_fallthru
        _
    $region12: #{resnet_forward.1} parent=5 // pred_fallthru
      _
    %p274 = scmp.lt.s32.totalorder %s15, 2
    // Predicated region
    $region45: #{resnet_forward.1} parent=5 // pred_check
      %p275 = pneg %p274
    $region46: #{resnet_forward.1} parent=5 // pred_check_branch
      %277 = sbr.rel (%p275) target = $region48
    $region47: #{resnet_forward.1} parent=5 // pred_region
      // Predicated region
      $region49: #{resnet_forward.1} parent=47 // pred_check
        %p278 = pneg %p35
      $region50: #{resnet_forward.1} parent=47 // pred_check_branch
        %280 = sbr.rel (%p278) target = $region52
      $region51: #{resnet_forward.1} parent=47 // pred_region
        %s281 = smul.u32 16, %s15
        %p282 = scmp.lt.s32.totalorder %s281, 31
        %s283 = scalar_select %p282, %s281, 31
        %s284 = smul.addr %s283, 4
        %s285 = scalar_lea.vmem %s0, %s284
        %s286 = smul.u32 16, %s15
      $region52: #{resnet_forward.1} parent=47 // pred_fallthru
        _
    $region48: #{resnet_forward.1} parent=5 // pred_fallthru
      _
    %p287 = scmp.le.s32.totalorder 1, %s15
    %p288 = scmp.lt.s32.totalorder %s15, 3
    %p289 = pnand %p287, %p288
    %p290 = pneg %p289
    // Predicated region
    $region53: #{resnet_forward.1} parent=5 // pred_check
      _
    $region54: #{resnet_forward.1} parent=5 // pred_check_branch
      %292 = sbr.rel (%p289) target = $region56
    $region55: #{resnet_forward.1} parent=5 // pred_region
      %s293 = ssub.s32 %s15, 1
      %s294 = smul.u32 16, %s20
      %p295 = scmp.lt.s32.totalorder %s294, 31
      %s296 = scalar_select %p295, %s294, 31
      %s297 = smul.addr %s296, 4
      %s298 = scalar_lea.vmem %s0, %s297
      %p299 = pneg %p41
      %p300 = pneg %p38
      %p301 = pneg %p62
      %p302 = pneg %p59
      %p303 = pneg %p83
      %p304 = pneg %p80
      %p305 = pneg %p104
      %p306 = pneg %p101
      %p307 = pneg %p125
      %p308 = pneg %p122
      %p309 = pneg %p146
      %p310 = pneg %p143
      %p311 = pneg %p167
      %p312 = pneg %p164
      %p313 = pneg %p188
      %p314 = pneg %p185
      %p315 = pneg %p209
      %p316 = pneg %p206
      %p317 = pneg %p235
      %p318 = pneg %p232
      %s319 = smul.u32 16, %s20
      %p320 = scmp.lt.s32.totalorder %s319, 31
      %s321 = scalar_select %p320, %s319, 31
      %s322 = smul.addr %s321, 8
      %s323 = scalar_lea.vmem %s9, %s322
      %s324 = smul.u32 16, %s20
      %p325 = scmp.lt.s32.totalorder %s324, 31
      %s326 = scalar_select %p325, %s324, 31
      %s327 = smul.addr %s326, 4
      %s328 = scalar_lea.vmem %s0, %s327
      %s329 = smul.u32 16, %s20
      %s330 = smul.u32 16, %s20
      %p331 = scmp.lt.s32.totalorder %s330, 31
      %s332 = scalar_select %p331, %s330, 31
      %s333 = smul.addr %s332, 8
      %s334 = scalar_lea.vmem %s9, %s333
      %s335 = smul.u32 16, %s20
      %v337 = vld [vmem:[%s328] sm:$0xf]
      %v338 = vld [vmem:[%s328 + $0x4] sm:$0xf]
      %v339 = vld [vmem:[%s328 + $0x8] sm:$0xf]
      %v340 = vld [vmem:[%s328 + $0xc] sm:$0xf]
      %v341 = vld [vmem:[%s328 + $0x10] sm:$0xf]
      %v342 = vld [vmem:[%s328 + $0x14] sm:$0xf]
      %v343 = vld [vmem:[%s328 + $0x18] sm:$0xf]
      %v344 = vld [vmem:[%s328 + $0x1c] sm:$0xf]
      %v345 = vld [vmem:[%s328 + $0x20] sm:$0xf]
      %v346 = vld [vmem:[%s328 + $0x24] sm:$0xf]
      %v347 = vld [vmem:[%s328 + $0x28] sm:$0xf]
      %v348 = vld [vmem:[%s328 + $0x2c] sm:$0xf]
      %v349 = vld [vmem:[%s328 + $0x30] sm:$0xf]
      %v350 = vld [vmem:[%s328 + $0x34] sm:$0xf]
      %v351 = vld [vmem:[%s328 + $0x38] sm:$0xf]
      %v352 = vld [vmem:[%s328 + $0x3c] sm:$0xf]
      %v353 = vld [vmem:[%s1] sm:$0xff]
      %v354 = vld [vmem:[%s1 + $0x8] sm:$0xff]
      %v355 = vld [vmem:[%s1 + $0x10] sm:$0xff]
      %v356 = vld [vmem:[%s1 + $0x18] sm:$0xff]
      %v357 = vld [vmem:[%s2] sm:$0x3]
      %v359 = vlaneseq
      %v360 = vshrl.u32 %v359, 7
      %v361 = vsub.s32 0, %v360
      %v362 = vrot.slane %v357, %v361
      %v363 = vlaneseq
      %v364 = vshrl.u32 %v363, 7
      %v365 = vsub.s32 1, %v364
      %v366 = vrot.slane %v357, %v365
      %v385 = vunpack.c.l.b16 %v337
      %v386 = vunpack.c.l.b16 %v338
      %v387 = vunpack.c.l.b16 %v339
      %v388 = vunpack.c.l.b16 %v340
      %v389 = vunpack.c.l.b16 %v341
      %v390 = vunpack.c.l.b16 %v342
      %v391 = vunpack.c.l.b16 %v343
      %v392 = vunpack.c.l.b16 %v344
      %v393 = vunpack.c.l.b16 %v345
      %v394 = vunpack.c.l.b16 %v346
      %v395 = vunpack.c.l.b16 %v347
      %v396 = vunpack.c.l.b16 %v348
      %v397 = vunpack.c.l.b16 %v349
      %v398 = vunpack.c.l.b16 %v350
      %v399 = vunpack.c.l.b16 %v351
      %v400 = vunpack.c.l.b16 %v352
      %v401 = vpack.c.b16 %v386, %v385
      %v402 = vpack.c.b16 %v388, %v387
      %v403 = vpack.c.b16 %v390, %v389
      %v404 = vpack.c.b16 %v392, %v391
      %v405 = vpack.c.b16 %v394, %v393
      %v406 = vpack.c.b16 %v396, %v395
      %v407 = vpack.c.b16 %v398, %v397
      %v408 = vpack.c.b16 %v400, %v399
      %v413 = vunpack.c.l.b16 %v353
      %v414 = vunpack.c.h.b16 %v353
      %v415 = vunpack.c.l.b16 %v354
      %v416 = vunpack.c.h.b16 %v354
      %v417 = vunpack.c.l.b16 %v355
      %v418 = vunpack.c.h.b16 %v355
      %v419 = vunpack.c.l.b16 %v356
      %v420 = vunpack.c.h.b16 %v356
      %v421 = vpack.c.b16 %v415, %v413
      %v422 = vpack.c.b16 %v416, %v414
      %v423 = vpack.c.b16 %v419, %v417
      %v424 = vpack.c.b16 %v420, %v418
      %vm429 = vcmask 261120
      %v431 = vsel %vm429, %v401, 0
      %v434 = vsel %vm429, %v402, 0
      %v437 = vsel %vm429, %v403, 0
      %v440 = vsel %vm429, %v404, 0
      %v443 = vsel %vm429, %v405, 0
      %v446 = vsel %vm429, %v406, 0
      %v449 = vsel %vm429, %v407, 0
      %v452 = vsel %vm429, %v408, 0
      %454 = vmatprep.subr.bf16.mxu0 %v422
      %455 = vmatpush1.bf16.msra.mxu0 %v421
      %456 = vmatprep.subr.bf16.mxu0 %v424
      %457 = vmatpush1.bf16.msra.mxu0 %v423
      %458 = vmatprep.subr.bf16.mxu0 0
      %459 = vmatpush1.bf16.msra.mxu0 0
      %460 = vmatprep.subr.bf16.mxu0 0
      %461 = vmatpush1.bf16.msra.mxu0 0
      %462 = vmatprep.subr.bf16.mxu0 0
      %463 = vmatpush1.bf16.msra.mxu0 0
      %464 = vmatprep.subr.bf16.mxu0 0
      %465 = vmatpush1.bf16.msra.mxu0 0
      %466 = vmatprep.subr.bf16.mxu0 0
      %467 = vmatpush1.bf16.msra.mxu0 0
      %468 = vmatprep.subr.bf16.mxu0 0
      %469 = vmatpush1.bf16.msra.mxu0 0
      %470 = vmatprep.subr.bf16.mxu0 0
      %471 = vmatpush1.bf16.msra.mxu0 0
      %472 = vmatprep.subr.bf16.mxu0 0
      %473 = vmatpush1.bf16.msra.mxu0 0
      %474 = vmatprep.subr.bf16.mxu0 0
      %475 = vmatpush1.bf16.msra.mxu0 0
      %476 = vmatprep.subr.bf16.mxu0 0
      %477 = vmatpush1.bf16.msra.mxu0 0
      %478 = vmatprep.subr.bf16.mxu0 0
      %479 = vmatpush1.bf16.msra.mxu0 0
      %480 = vmatprep.subr.bf16.mxu0 0
      %481 = vmatpush1.bf16.msra.mxu0 0
      %482 = vmatprep.subr.bf16.mxu0 0
      %483 = vmatpush1.bf16.msra.mxu0 0
      %484 = vmatprep.subr.bf16.mxu0 0
      %485 = vmatpush1.bf16.msra.mxu0 0
      %486 = vmatprep.mubr.bf16.mxu0 0
      %487 = vmatmul.mubr.bf16.gmra.mrb[0].mxu0 %v431
      %v488 = vpop.f32.mrb[0].mxu0
      %v489 = vadd.f32 %v362, %v488
      %v490 = vpop.f32.mrb[0].mxu0
      %v491 = vadd.f32 %v366, %v490
      %v492 = vpop.f32.mrb[0].mxu0
      %v493 = vadd.f32 %v362, %v492
      %v494 = vpop.f32.mrb[0].mxu0
      %v495 = vadd.f32 %v366, %v494
      %496 = vmatprep.mubr.bf16.mxu0 0
      %497 = vmatmul.mubr.bf16.gmra.mrb[0].mxu0 %v434
      %v498 = vpop.f32.mrb[0].mxu0
      %v499 = vadd.f32 %v362, %v498
      %v500 = vpop.f32.mrb[0].mxu0
      %v501 = vadd.f32 %v366, %v500
      %v502 = vpop.f32.mrb[0].mxu0
      %v503 = vadd.f32 %v362, %v502
      %v504 = vpop.f32.mrb[0].mxu0
      %v505 = vadd.f32 %v366, %v504
      %506 = vmatprep.mubr.bf16.mxu0 0
      %507 = vmatmul.mubr.bf16.gmra.mrb[0].mxu0 %v437
      %v508 = vpop.f32.mrb[0].mxu0
      %v509 = vadd.f32 %v362, %v508
      %v510 = vpop.f32.mrb[0].mxu0
      %v511 = vadd.f32 %v366, %v510
      %v512 = vpop.f32.mrb[0].mxu0
      %v513 = vadd.f32 %v362, %v512
      %v514 = vpop.f32.mrb[0].mxu0
      %v515 = vadd.f32 %v366, %v514
      %516 = vmatprep.mubr.bf16.mxu0 0
      %517 = vmatmul.mubr.bf16.gmra.mrb[0].mxu0 %v440
      %v518 = vpop.f32.mrb[0].mxu0
      %v519 = vadd.f32 %v362, %v518
      %v520 = vpop.f32.mrb[0].mxu0
      %v521 = vadd.f32 %v366, %v520
      %v522 = vpop.f32.mrb[0].mxu0
      %v523 = vadd.f32 %v362, %v522
      %v524 = vpop.f32.mrb[0].mxu0
      %v525 = vadd.f32 %v366, %v524
      %526 = vmatprep.mubr.bf16.mxu0 0
      %527 = vmatmul.mubr.bf16.gmra.mrb[0].mxu0 %v443
      %v528 = vpop.f32.mrb[0].mxu0
      %v529 = vadd.f32 %v362, %v528
      %v530 = vpop.f32.mrb[0].mxu0
      %v531 = vadd.f32 %v366, %v530
      %v532 = vpop.f32.mrb[0].mxu0
      %v533 = vadd.f32 %v362, %v532
      %v534 = vpop.f32.mrb[0].mxu0
      %v535 = vadd.f32 %v366, %v534
      %536 = vmatprep.mubr.bf16.mxu0 0
      %537 = vmatmul.mubr.bf16.gmra.mrb[0].mxu0 %v446
      %v538 = vpop.f32.mrb[0].mxu0
      %v539 = vadd.f32 %v362, %v538
      %v540 = vpop.f32.mrb[0].mxu0
      %v541 = vadd.f32 %v366, %v540
      %v542 = vpop.f32.mrb[0].mxu0
      %v543 = vadd.f32 %v362, %v542
      %v544 = vpop.f32.mrb[0].mxu0
      %v545 = vadd.f32 %v366, %v544
      %546 = vmatprep.mubr.bf16.mxu0 0
      %547 = vmatmul.mubr.bf16.gmra.mrb[0].mxu0 %v449
      %v548 = vpop.f32.mrb[0].mxu0
      %v549 = vadd.f32 %v362, %v548
      %v550 = vpop.f32.mrb[0].mxu0
      %v551 = vadd.f32 %v366, %v550
      %v552 = vpop.f32.mrb[0].mxu0
      %v553 = vadd.f32 %v362, %v552
      %v554 = vpop.f32.mrb[0].mxu0
      %v555 = vadd.f32 %v366, %v554
      %556 = vmatprep.mubr.bf16.mxu0 0
      %557 = vmatmul.mubr.bf16.gmra.mrb[0].mxu0 %v452
      %v558 = vpop.f32.mrb[0].mxu0
      %v559 = vadd.f32 %v362, %v558
      %v560 = vpop.f32.mrb[0].mxu0
      %v561 = vadd.f32 %v366, %v560
      %v562 = vpop.f32.mrb[0].mxu0
      %v563 = vadd.f32 %v362, %v562
      %v564 = vpop.f32.mrb[0].mxu0
      %v565 = vadd.f32 %v366, %v564
      %566 = vdwg.mxu0
      %v567 = vmin.f32 %v489, 0.0
      %v568 = vmin.f32 %v491, 0.0
      %v569 = vmin.f32 %v493, 0.0
      %v570 = vmin.f32 %v495, 0.0
      %v571 = vmin.f32 %v499, 0.0
      %v572 = vmin.f32 %v501, 0.0
      %v573 = vmin.f32 %v503, 0.0
      %v574 = vmin.f32 %v505, 0.0
      %v575 = vmin.f32 %v509, 0.0
      %v576 = vmin.f32 %v511, 0.0
      %v577 = vmin.f32 %v513, 0.0
      %v578 = vmin.f32 %v515, 0.0
      %v579 = vmin.f32 %v519, 0.0
      %v580 = vmin.f32 %v521, 0.0
      %v581 = vmin.f32 %v523, 0.0
      %v582 = vmin.f32 %v525, 0.0
      %v583 = vmin.f32 %v529, 0.0
      %v584 = vmin.f32 %v531, 0.0
      %v585 = vmin.f32 %v533, 0.0
      %v586 = vmin.f32 %v535, 0.0
      %v587 = vmin.f32 %v539, 0.0
      %v588 = vmin.f32 %v541, 0.0
      %v589 = vmin.f32 %v543, 0.0
      %v590 = vmin.f32 %v545, 0.0
      %v591 = vmin.f32 %v549, 0.0
      %v592 = vmin.f32 %v551, 0.0
      %v593 = vmin.f32 %v553, 0.0
      %v594 = vmin.f32 %v555, 0.0
      %v595 = vmin.f32 %v559, 0.0
      %v596 = vmin.f32 %v561, 0.0
      %v597 = vmin.f32 %v563, 0.0
      %v598 = vmin.f32 %v565, 0.0
      %v599 = vmul.f32 %v567, 1.442695
      %v600 = vpow.pop %v599
      %v601 = vmul.f32 %v568, 1.442695
      %v602 = vpow.pop %v601
      %v603 = vmul.f32 %v569, 1.442695
      %v604 = vpow.pop %v603
      %v605 = vmul.f32 %v570, 1.442695
      %v606 = vpow.pop %v605
      %v607 = vmul.f32 %v571, 1.442695
      %v608 = vpow.pop %v607
      %v609 = vmul.f32 %v572, 1.442695
      %v610 = vpow.pop %v609
      %v611 = vmul.f32 %v573, 1.442695
      %v612 = vpow.pop %v611
      %v613 = vmul.f32 %v574, 1.442695
      %v614 = vpow.pop %v613
      %v615 = vmul.f32 %v575, 1.442695
      %v616 = vpow.pop %v615
      %v617 = vmul.f32 %v576, 1.442695
      %v618 = vpow.pop %v617
      %v619 = vmul.f32 %v577, 1.442695
      %v620 = vpow.pop %v619
      %v621 = vmul.f32 %v578, 1.442695
      %v622 = vpow.pop %v621
      %v623 = vmul.f32 %v579, 1.442695
      %v624 = vpow.pop %v623
      %v625 = vmul.f32 %v580, 1.442695
      %v626 = vpow.pop %v625
      %v627 = vmul.f32 %v581, 1.442695
      %v628 = vpow.pop %v627
      %v629 = vmul.f32 %v582, 1.442695
      %v630 = vpow.pop %v629
      %v631 = vmul.f32 %v583, 1.442695
      %v632 = vpow.pop %v631
      %v633 = vmul.f32 %v584, 1.442695
      %v634 = vpow.pop %v633
      %v635 = vmul.f32 %v585, 1.442695
      %v636 = vpow.pop %v635
      %v637 = vmul.f32 %v586, 1.442695
      %v638 = vpow.pop %v637
      %v639 = vmul.f32 %v587, 1.442695
      %v640 = vpow.pop %v639
      %v641 = vmul.f32 %v588, 1.442695
      %v642 = vpow.pop %v641
      %v643 = vmul.f32 %v589, 1.442695
      %v644 = vpow.pop %v643
      %v645 = vmul.f32 %v590, 1.442695
      %v646 = vpow.pop %v645
      %v647 = vmul.f32 %v591, 1.442695
      %v648 = vpow.pop %v647
      %v649 = vmul.f32 %v592, 1.442695
      %v650 = vpow.pop %v649
      %v651 = vmul.f32 %v593, 1.442695
      %v652 = vpow.pop %v651
      %v653 = vmul.f32 %v594, 1.442695
      %v654 = vpow.pop %v653
      %v655 = vmul.f32 %v595, 1.442695
      %v656 = vpow.pop %v655
      %v657 = vmul.f32 %v596, 1.442695
      %v658 = vpow.pop %v657
      %v659 = vmul.f32 %v597, 1.442695
      %v660 = vpow.pop %v659
      %v661 = vmul.f32 %v598, 1.442695
      %v662 = vpow.pop %v661
      %v663 = vsub.f32 %v600, 1.0
      %v664 = vsub.f32 %v602, 1.0
      %v665 = vsub.f32 %v604, 1.0
      %v666 = vsub.f32 %v606, 1.0
      %v667 = vsub.f32 %v608, 1.0
      %v668 = vsub.f32 %v610, 1.0
      %v669 = vsub.f32 %v612, 1.0
      %v670 = vsub.f32 %v614, 1.0
      %v671 = vsub.f32 %v616, 1.0
      %v672 = vsub.f32 %v618, 1.0
      %v673 = vsub.f32 %v620, 1.0
      %v674 = vsub.f32 %v622, 1.0
      %v675 = vsub.f32 %v624, 1.0
      %v676 = vsub.f32 %v626, 1.0
      %v677 = vsub.f32 %v628, 1.0
      %v678 = vsub.f32 %v630, 1.0
      %v679 = vsub.f32 %v632, 1.0
      %v680 = vsub.f32 %v634, 1.0
      %v681 = vsub.f32 %v636, 1.0
      %v682 = vsub.f32 %v638, 1.0
      %v683 = vsub.f32 %v640, 1.0
      %v684 = vsub.f32 %v642, 1.0
      %v685 = vsub.f32 %v644, 1.0
      %v686 = vsub.f32 %v646, 1.0
      %v687 = vsub.f32 %v648, 1.0
      %v688 = vsub.f32 %v650, 1.0
      %v689 = vsub.f32 %v652, 1.0
      %v690 = vsub.f32 %v654, 1.0
      %v691 = vsub.f32 %v656, 1.0
      %v692 = vsub.f32 %v658, 1.0
      %v693 = vsub.f32 %v660, 1.0
      %v694 = vsub.f32 %v662, 1.0
      %v695 = vmul.f32 %v663, 1.6732632
      %v696 = vmul.f32 %v664, 1.6732632
      %v697 = vmul.f32 %v665, 1.6732632
      %v698 = vmul.f32 %v666, 1.6732632
      %v699 = vmul.f32 %v667, 1.6732632
      %v700 = vmul.f32 %v668, 1.6732632
      %v701 = vmul.f32 %v669, 1.6732632
      %v702 = vmul.f32 %v670, 1.6732632
      %v703 = vmul.f32 %v671, 1.6732632
      %v704 = vmul.f32 %v672, 1.6732632
      %v705 = vmul.f32 %v673, 1.6732632
      %v706 = vmul.f32 %v674, 1.6732632
      %v707 = vmul.f32 %v675, 1.6732632
      %v708 = vmul.f32 %v676, 1.6732632
      %v709 = vmul.f32 %v677, 1.6732632
      %v710 = vmul.f32 %v678, 1.6732632
      %v711 = vmul.f32 %v679, 1.6732632
      %v712 = vmul.f32 %v680, 1.6732632
      %v713 = vmul.f32 %v681, 1.6732632
      %v714 = vmul.f32 %v682, 1.6732632
      %v715 = vmul.f32 %v683, 1.6732632
      %v716 = vmul.f32 %v684, 1.6732632
      %v717 = vmul.f32 %v685, 1.6732632
      %v718 = vmul.f32 %v686, 1.6732632
      %v719 = vmul.f32 %v687, 1.6732632
      %v720 = vmul.f32 %v688, 1.6732632
      %v721 = vmul.f32 %v689, 1.6732632
      %v722 = vmul.f32 %v690, 1.6732632
      %v723 = vmul.f32 %v691, 1.6732632
      %v724 = vmul.f32 %v692, 1.6732632
      %v725 = vmul.f32 %v693, 1.6732632
      %v726 = vmul.f32 %v694, 1.6732632
      %vm727 = vcmp.gt.f32.partialorder %v489, 0.0
      %vm728 = vcmp.gt.f32.partialorder %v491, 0.0
      %vm729 = vcmp.gt.f32.partialorder %v493, 0.0
      %vm730 = vcmp.gt.f32.partialorder %v495, 0.0
      %vm731 = vcmp.gt.f32.partialorder %v499, 0.0
      %vm732 = vcmp.gt.f32.partialorder %v501, 0.0
      %vm733 = vcmp.gt.f32.partialorder %v503, 0.0
      %vm734 = vcmp.gt.f32.partialorder %v505, 0.0
      %vm735 = vcmp.gt.f32.partialorder %v509, 0.0
      %vm736 = vcmp.gt.f32.partialorder %v511, 0.0
      %vm737 = vcmp.gt.f32.partialorder %v513, 0.0
      %vm738 = vcmp.gt.f32.partialorder %v515, 0.0
      %vm739 = vcmp.gt.f32.partialorder %v519, 0.0
      %vm740 = vcmp.gt.f32.partialorder %v521, 0.0
      %vm741 = vcmp.gt.f32.partialorder %v523, 0.0
      %vm742 = vcmp.gt.f32.partialorder %v525, 0.0
      %vm743 = vcmp.gt.f32.partialorder %v529, 0.0
      %vm744 = vcmp.gt.f32.partialorder %v531, 0.0
      %vm745 = vcmp.gt.f32.partialorder %v533, 0.0
      %vm746 = vcmp.gt.f32.partialorder %v535, 0.0
      %vm747 = vcmp.gt.f32.partialorder %v539, 0.0
      %vm748 = vcmp.gt.f32.partialorder %v541, 0.0
      %vm749 = vcmp.gt.f32.partialorder %v543, 0.0
      %vm750 = vcmp.gt.f32.partialorder %v545, 0.0
      %vm751 = vcmp.gt.f32.partialorder %v549, 0.0
      %vm752 = vcmp.gt.f32.partialorder %v551, 0.0
      %vm753 = vcmp.gt.f32.partialorder %v553, 0.0
      %vm754 = vcmp.gt.f32.partialorder %v555, 0.0
      %vm755 = vcmp.gt.f32.partialorder %v559, 0.0
      %vm756 = vcmp.gt.f32.partialorder %v561, 0.0
      %vm757 = vcmp.gt.f32.partialorder %v563, 0.0
      %vm758 = vcmp.gt.f32.partialorder %v565, 0.0
      %v759 = vsel %vm727, %v489, %v695
      %v760 = vsel %vm728, %v491, %v696
      %v761 = vsel %vm729, %v493, %v697
      %v762 = vsel %vm730, %v495, %v698
      %v763 = vsel %vm731, %v499, %v699
      %v764 = vsel %vm732, %v501, %v700
      %v765 = vsel %vm733, %v503, %v701
      %v766 = vsel %vm734, %v505, %v702
      %v767 = vsel %vm735, %v509, %v703
      %v768 = vsel %vm736, %v511, %v704
      %v769 = vsel %vm737, %v513, %v705
      %v770 = vsel %vm738, %v515, %v706
      %v771 = vsel %vm739, %v519, %v707
      %v772 = vsel %vm740, %v521, %v708
      %v773 = vsel %vm741, %v523, %v709
      %v774 = vsel %vm742, %v525, %v710
      %v775 = vsel %vm743, %v529, %v711
      %v776 = vsel %vm744, %v531, %v712
      %v777 = vsel %vm745, %v533, %v713
      %v778 = vsel %vm746, %v535, %v714
      %v779 = vsel %vm747, %v539, %v715
      %v780 = vsel %vm748, %v541, %v716
      %v781 = vsel %vm749, %v543, %v717
      %v782 = vsel %vm750, %v545, %v718
      %v783 = vsel %vm751, %v549, %v719
      %v784 = vsel %vm752, %v551, %v720
      %v785 = vsel %vm753, %v553, %v721
      %v786 = vsel %vm754, %v555, %v722
      %v787 = vsel %vm755, %v559, %v723
      %v788 = vsel %vm756, %v561, %v724
      %v789 = vsel %vm757, %v563, %v725
      %v790 = vsel %vm758, %v565, %v726
      %v791 = vmul.f32 %v759, 1.050701
      %v792 = vmul.f32 %v760, 1.050701
      %v793 = vmul.f32 %v761, 1.050701
      %v794 = vmul.f32 %v762, 1.050701
      %v795 = vmul.f32 %v763, 1.050701
      %v796 = vmul.f32 %v764, 1.050701
      %v797 = vmul.f32 %v765, 1.050701
      %v798 = vmul.f32 %v766, 1.050701
      %v799 = vmul.f32 %v767, 1.050701
      %v800 = vmul.f32 %v768, 1.050701
      %v801 = vmul.f32 %v769, 1.050701
      %v802 = vmul.f32 %v770, 1.050701
      %v803 = vmul.f32 %v771, 1.050701
      %v804 = vmul.f32 %v772, 1.050701
      %v805 = vmul.f32 %v773, 1.050701
      %v806 = vmul.f32 %v774, 1.050701
      %v807 = vmul.f32 %v775, 1.050701
      %v808 = vmul.f32 %v776, 1.050701
      %v809 = vmul.f32 %v777, 1.050701
      %v810 = vmul.f32 %v778, 1.050701
      %v811 = vmul.f32 %v779, 1.050701
      %v812 = vmul.f32 %v780, 1.050701
      %v813 = vmul.f32 %v781, 1.050701
      %v814 = vmul.f32 %v782, 1.050701
      %v815 = vmul.f32 %v783, 1.050701
      %v816 = vmul.f32 %v784, 1.050701
      %v817 = vmul.f32 %v785, 1.050701
      %v818 = vmul.f32 %v786, 1.050701
      %v819 = vmul.f32 %v787, 1.050701
      %v820 = vmul.f32 %v788, 1.050701
      %v821 = vmul.f32 %v789, 1.050701
      %v822 = vmul.f32 %v790, 1.050701
      %v823 = vpack.c.bf16 %v793, %v791
      %v824 = vpack.c.bf16 %v794, %v792
      %v825 = vpack.c.bf16 %v797, %v795
      %v826 = vpack.c.bf16 %v798, %v796
      %v827 = vpack.c.bf16 %v801, %v799
      %v828 = vpack.c.bf16 %v802, %v800
      %v829 = vpack.c.bf16 %v805, %v803
      %v830 = vpack.c.bf16 %v806, %v804
      %v831 = vpack.c.bf16 %v809, %v807
      %v832 = vpack.c.bf16 %v810, %v808
      %v833 = vpack.c.bf16 %v813, %v811
      %v834 = vpack.c.bf16 %v814, %v812
      %v835 = vpack.c.bf16 %v817, %v815
      %v836 = vpack.c.bf16 %v818, %v816
      %v837 = vpack.c.bf16 %v821, %v819
      %v838 = vpack.c.bf16 %v822, %v820
      %v839 = vld [vmem:[%s3] sm:$0xf]
      %v840 = vld [vmem:[%s3 + $0x4] sm:$0xf]
      %v841 = vld [vmem:[%s3 + $0x8] sm:$0xf]
      %v842 = vld [vmem:[%s3 + $0xc] sm:$0xf]
      %v843 = vld [vmem:[%s3 + $0x10] sm:$0xf]
      %v844 = vld [vmem:[%s3 + $0x14] sm:$0xf]
      %v845 = vld [vmem:[%s3 + $0x18] sm:$0xf]
      %v846 = vld [vmem:[%s3 + $0x1c] sm:$0xf]
      %v847 = vld [vmem:[%s3 + $0x20] sm:$0xf]
      %v848 = vld [vmem:[%s3 + $0x24] sm:$0xf]
      %v849 = vld [vmem:[%s3 + $0x28] sm:$0xf]
      %v850 = vld [vmem:[%s3 + $0x2c] sm:$0xf]
      %v851 = vld [vmem:[%s3 + $0x30] sm:$0xf]
      %v852 = vld [vmem:[%s3 + $0x34] sm:$0xf]
      %v853 = vld [vmem:[%s3 + $0x38] sm:$0xf]
      %v854 = vld [vmem:[%s3 + $0x3c] sm:$0xf]
      %v855 = vld [vmem:[%s3 + $0x40] sm:$0xf]
      %v856 = vld [vmem:[%s3 + $0x44] sm:$0xf]
      %v857 = vld [vmem:[%s3 + $0x48] sm:$0xf]
      %v858 = vld [vmem:[%s3 + $0x4c] sm:$0xf]
      %v859 = vld [vmem:[%s3 + $0x50] sm:$0xf]
      %v860 = vld [vmem:[%s3 + $0x54] sm:$0xf]
      %v861 = vld [vmem:[%s3 + $0x58] sm:$0xf]
      %v862 = vld [vmem:[%s3 + $0x5c] sm:$0xf]
      %v863 = vld [vmem:[%s3 + $0x60] sm:$0xf]
      %v864 = vld [vmem:[%s3 + $0x64] sm:$0xf]
      %v865 = vld [vmem:[%s3 + $0x68] sm:$0xf]
      %v866 = vld [vmem:[%s3 + $0x6c] sm:$0xf]
      %v867 = vld [vmem:[%s3 + $0x70] sm:$0xf]
      %v868 = vld [vmem:[%s3 + $0x74] sm:$0xf]
      %v869 = vld [vmem:[%s3 + $0x78] sm:$0xf]
      %v870 = vld [vmem:[%s3 + $0x7c] sm:$0xf]
      %v903 = vunpack.c.l.b16 %v839
      %v904 = vunpack.c.l.b16 %v840
      %v905 = vunpack.c.l.b16 %v841
      %v906 = vunpack.c.l.b16 %v842
      %v907 = vunpack.c.l.b16 %v843
      %v908 = vunpack.c.l.b16 %v844
      %v909 = vunpack.c.l.b16 %v845
      %v910 = vunpack.c.l.b16 %v846
      %v911 = vunpack.c.l.b16 %v847
      %v912 = vunpack.c.l.b16 %v848
      %v913 = vunpack.c.l.b16 %v849
      %v914 = vunpack.c.l.b16 %v850
      %v915 = vunpack.c.l.b16 %v851
      %v916 = vunpack.c.l.b16 %v852
      %v917 = vunpack.c.l.b16 %v853
      %v918 = vunpack.c.l.b16 %v854
      %v919 = vunpack.c.l.b16 %v855
      %v920 = vunpack.c.l.b16 %v856
      %v921 = vunpack.c.l.b16 %v857
      %v922 = vunpack.c.l.b16 %v858
      %v923 = vunpack.c.l.b16 %v859
      %v924 = vunpack.c.l.b16 %v860
      %v925 = vunpack.c.l.b16 %v861
      %v926 = vunpack.c.l.b16 %v862
      %v927 = vunpack.c.l.b16 %v863
      %v928 = vunpack.c.l.b16 %v864
      %v929 = vunpack.c.l.b16 %v865
      %v930 = vunpack.c.l.b16 %v866
      %v931 = vunpack.c.l.b16 %v867
      %v932 = vunpack.c.l.b16 %v868
      %v933 = vunpack.c.l.b16 %v869
      %v934 = vunpack.c.l.b16 %v870
      %v935 = vpack.c.b16 %v904, %v903
      %v936 = vpack.c.b16 %v906, %v905
      %v937 = vpack.c.b16 %v908, %v907
      %v938 = vpack.c.b16 %v910, %v909
      %v939 = vpack.c.b16 %v912, %v911
      %v940 = vpack.c.b16 %v914, %v913
      %v941 = vpack.c.b16 %v916, %v915
      %v942 = vpack.c.b16 %v918, %v917
      %v943 = vpack.c.b16 %v920, %v919
      %v944 = vpack.c.b16 %v922, %v921
      %v945 = vpack.c.b16 %v924, %v923
      %v946 = vpack.c.b16 %v926, %v925
      %v947 = vpack.c.b16 %v928, %v927
      %v948 = vpack.c.b16 %v930, %v929
      %v949 = vpack.c.b16 %v932, %v931
      %v950 = vpack.c.b16 %v934, %v933
      %967 = vmatprep.subr.bf16.mxu0 0
      %968 = vmatpush1.bf16.msra.mxu0 %v935
      %969 = vmatprep.subr.bf16.mxu0 0
      %970 = vmatpush1.bf16.msra.mxu0 %v936
      %971 = vmatprep.subr.bf16.mxu0 0
      %972 = vmatpush1.bf16.msra.mxu0 %v937
      %973 = vmatprep.subr.bf16.mxu0 0
      %974 = vmatpush1.bf16.msra.mxu0 %v938
      %975 = vmatprep.subr.bf16.mxu0 0
      %976 = vmatpush1.bf16.msra.mxu0 %v939
      %977 = vmatprep.subr.bf16.mxu0 0
      %978 = vmatpush1.bf16.msra.mxu0 %v940
      %979 = vmatprep.subr.bf16.mxu0 0
      %980 = vmatpush1.bf16.msra.mxu0 %v941
      %981 = vmatprep.subr.bf16.mxu0 0
      %982 = vmatpush1.bf16.msra.mxu0 %v942
      %983 = vmatprep.subr.bf16.mxu0 0
      %984 = vmatpush1.bf16.msra.mxu0 %v943
      %985 = vmatprep.subr.bf16.mxu0 0
      %986 = vmatpush1.bf16.msra.mxu0 %v944
      %987 = vmatprep.subr.bf16.mxu0 0
      %988 = vmatpush1.bf16.msra.mxu0 %v945
      %989 = vmatprep.subr.bf16.mxu0 0
      %990 = vmatpush1.bf16.msra.mxu0 %v946
      %991 = vmatprep.subr.bf16.mxu0 0
      %992 = vmatpush1.bf16.msra.mxu0 %v947
      %993 = vmatprep.subr.bf16.mxu0 0
      %994 = vmatpush1.bf16.msra.mxu0 %v948
      %995 = vmatprep.subr.bf16.mxu0 0
      %996 = vmatpush1.bf16.msra.mxu0 %v949
      %997 = vmatprep.subr.bf16.mxu0 0
      %998 = vmatpush1.bf16.msra.mxu0 %v950
      %999 = vmatprep.mubr.bf16.mxu0 %v824
      %1000 = vmatmul.mubr.bf16.gmra.mrb[0].mxu0 %v823
      %v1001 = vpop.f32.mrb[0].mxu0
      %v1002 = vadd.f32 0.0, %v1001
      %v1003 = vpop.f32.mrb[0].mxu0
      %v1004 = vpop.f32.mrb[0].mxu0
      %v1005 = vadd.f32 0.0, %v1004
      %v1006 = vpop.f32.mrb[0].mxu0
      %1007 = vmatprep.mubr.bf16.mxu0 %v826
      %1008 = vmatmul.mubr.bf16.gmra.mrb[0].mxu0 %v825
      %v1009 = vpop.f32.mrb[0].mxu0
      %v1010 = vadd.f32 0.0, %v1009
      %v1011 = vpop.f32.mrb[0].mxu0
      %v1012 = vpop.f32.mrb[0].mxu0
      %v1013 = vadd.f32 0.0, %v1012
      %v1014 = vpop.f32.mrb[0].mxu0
      %1015 = vmatprep.mubr.bf16.mxu0 %v828
      %1016 = vmatmul.mubr.bf16.gmra.mrb[0].mxu0 %v827
      %v1017 = vpop.f32.mrb[0].mxu0
      %v1018 = vadd.f32 0.0, %v1017
      %v1019 = vpop.f32.mrb[0].mxu0
      %v1020 = vpop.f32.mrb[0].mxu0
      %v1021 = vadd.f32 0.0, %v1020
      %v1022 = vpop.f32.mrb[0].mxu0
      %1023 = vmatprep.mubr.bf16.mxu0 %v830
      %1024 = vmatmul.mubr.bf16.gmra.mrb[0].mxu0 %v829
      %v1025 = vpop.f32.mrb[0].mxu0
      %v1026 = vadd.f32 0.0, %v1025
      %v1027 = vpop.f32.mrb[0].mxu0
      %v1028 = vpop.f32.mrb[0].mxu0
      %v1029 = vadd.f32 0.0, %v1028
      %v1030 = vpop.f32.mrb[0].mxu0
      %1031 = vmatprep.mubr.bf16.mxu0 %v832
      %1032 = vmatmul.mubr.bf16.gmra.mrb[0].mxu0 %v831
      %v1033 = vpop.f32.mrb[0].mxu0
      %v1034 = vadd.f32 0.0, %v1033
      %v1035 = vpop.f32.mrb[0].mxu0
      %v1036 = vpop.f32.mrb[0].mxu0
      %v1037 = vadd.f32 0.0, %v1036
      %v1038 = vpop.f32.mrb[0].mxu0
      %1039 = vmatprep.mubr.bf16.mxu0 %v834
      %1040 = vmatmul.mubr.bf16.gmra.mrb[0].mxu0 %v833
      %v1041 = vpop.f32.mrb[0].mxu0
      %v1042 = vadd.f32 0.0, %v1041
      %v1043 = vpop.f32.mrb[0].mxu0
      %v1044 = vpop.f32.mrb[0].mxu0
      %v1045 = vadd.f32 0.0, %v1044
      %v1046 = vpop.f32.mrb[0].mxu0
      %1047 = vmatprep.mubr.bf16.mxu0 %v836
      %1048 = vmatmul.mubr.bf16.gmra.mrb[0].mxu0 %v835
      %v1049 = vpop.f32.mrb[0].mxu0
      %v1050 = vadd.f32 0.0, %v1049
      %v1051 = vpop.f32.mrb[0].mxu0
      %v1052 = vpop.f32.mrb[0].mxu0
      %v1053 = vadd.f32 0.0, %v1052
      %v1054 = vpop.f32.mrb[0].mxu0
      %1055 = vmatprep.mubr.bf16.mxu0 %v838
      %1056 = vmatmul.mubr.bf16.gmra.mrb[0].mxu0 %v837
      %v1057 = vpop.f32.mrb[0].mxu0
      %v1058 = vadd.f32 0.0, %v1057
      %v1059 = vpop.f32.mrb[0].mxu0
      %v1060 = vpop.f32.mrb[0].mxu0
      %v1061 = vadd.f32 0.0, %v1060
      %v1062 = vpop.f32.mrb[0].mxu0
      %1063 = vdwg.mxu0
      %v1064 = vmin.f32 %v1002, 0.0
      %v1065 = vmin.f32 %v1005, 0.0
      %v1066 = vmin.f32 %v1010, 0.0
      %v1067 = vmin.f32 %v1013, 0.0
      %v1068 = vmin.f32 %v1018, 0.0
      %v1069 = vmin.f32 %v1021, 0.0
      %v1070 = vmin.f32 %v1026, 0.0
      %v1071 = vmin.f32 %v1029, 0.0
      %v1072 = vmin.f32 %v1034, 0.0
      %v1073 = vmin.f32 %v1037, 0.0
      %v1074 = vmin.f32 %v1042, 0.0
      %v1075 = vmin.f32 %v1045, 0.0
      %v1076 = vmin.f32 %v1050, 0.0
      %v1077 = vmin.f32 %v1053, 0.0
      %v1078 = vmin.f32 %v1058, 0.0
      %v1079 = vmin.f32 %v1061, 0.0
      %v1080 = vmul.f32 %v1064, 1.442695
      %v1081 = vpow.pop %v1080
      %v1082 = vmul.f32 %v1065, 1.442695
      %v1083 = vpow.pop %v1082
      %v1084 = vmul.f32 %v1066, 1.442695
      %v1085 = vpow.pop %v1084
      %v1086 = vmul.f32 %v1067, 1.442695
      %v1087 = vpow.pop %v1086
      %v1088 = vmul.f32 %v1068, 1.442695
      %v1089 = vpow.pop %v1088
      %v1090 = vmul.f32 %v1069, 1.442695
      %v1091 = vpow.pop %v1090
      %v1092 = vmul.f32 %v1070, 1.442695
      %v1093 = vpow.pop %v1092
      %v1094 = vmul.f32 %v1071, 1.442695
      %v1095 = vpow.pop %v1094
      %v1096 = vmul.f32 %v1072, 1.442695
      %v1097 = vpow.pop %v1096
      %v1098 = vmul.f32 %v1073, 1.442695
      %v1099 = vpow.pop %v1098
      %v1100 = vmul.f32 %v1074, 1.442695
      %v1101 = vpow.pop %v1100
      %v1102 = vmul.f32 %v1075, 1.442695
      %v1103 = vpow.pop %v1102
      %v1104 = vmul.f32 %v1076, 1.442695
      %v1105 = vpow.pop %v1104
      %v1106 = vmul.f32 %v1077, 1.442695
      %v1107 = vpow.pop %v1106
      %v1108 = vmul.f32 %v1078, 1.442695
      %v1109 = vpow.pop %v1108
      %v1110 = vmul.f32 %v1079, 1.442695
      %v1111 = vpow.pop %v1110
      %v1112 = vsub.f32 %v1081, 1.0
      %v1113 = vsub.f32 %v1083, 1.0
      %v1114 = vsub.f32 %v1085, 1.0
      %v1115 = vsub.f32 %v1087, 1.0
      %v1116 = vsub.f32 %v1089, 1.0
      %v1117 = vsub.f32 %v1091, 1.0
      %v1118 = vsub.f32 %v1093, 1.0
      %v1119 = vsub.f32 %v1095, 1.0
      %v1120 = vsub.f32 %v1097, 1.0
      %v1121 = vsub.f32 %v1099, 1.0
      %v1122 = vsub.f32 %v1101, 1.0
      %v1123 = vsub.f32 %v1103, 1.0
      %v1124 = vsub.f32 %v1105, 1.0
      %v1125 = vsub.f32 %v1107, 1.0
      %v1126 = vsub.f32 %v1109, 1.0
      %v1127 = vsub.f32 %v1111, 1.0
      %v1128 = vmul.f32 %v1112, 1.6732632
      %v1129 = vmul.f32 %v1113, 1.6732632
      %v1130 = vmul.f32 %v1114, 1.6732632
      %v1131 = vmul.f32 %v1115, 1.6732632
      %v1132 = vmul.f32 %v1116, 1.6732632
      %v1133 = vmul.f32 %v1117, 1.6732632
      %v1134 = vmul.f32 %v1118, 1.6732632
      %v1135 = vmul.f32 %v1119, 1.6732632
      %v1136 = vmul.f32 %v1120, 1.6732632
      %v1137 = vmul.f32 %v1121, 1.6732632
      %v1138 = vmul.f32 %v1122, 1.6732632
      %v1139 = vmul.f32 %v1123, 1.6732632
      %v1140 = vmul.f32 %v1124, 1.6732632
      %v1141 = vmul.f32 %v1125, 1.6732632
      %v1142 = vmul.f32 %v1126, 1.6732632
      %v1143 = vmul.f32 %v1127, 1.6732632
      %vm1144 = vcmp.gt.f32.partialorder %v1002, 0.0
      %vm1145 = vcmp.gt.f32.partialorder %v1005, 0.0
      %vm1146 = vcmp.gt.f32.partialorder %v1010, 0.0
      %vm1147 = vcmp.gt.f32.partialorder %v1013, 0.0
      %vm1148 = vcmp.gt.f32.partialorder %v1018, 0.0
      %vm1149 = vcmp.gt.f32.partialorder %v1021, 0.0
      %vm1150 = vcmp.gt.f32.partialorder %v1026, 0.0
      %vm1151 = vcmp.gt.f32.partialorder %v1029, 0.0
      %vm1152 = vcmp.gt.f32.partialorder %v1034, 0.0
      %vm1153 = vcmp.gt.f32.partialorder %v1037, 0.0
      %vm1154 = vcmp.gt.f32.partialorder %v1042, 0.0
      %vm1155 = vcmp.gt.f32.partialorder %v1045, 0.0
      %vm1156 = vcmp.gt.f32.partialorder %v1050, 0.0
      %vm1157 = vcmp.gt.f32.partialorder %v1053, 0.0
      %vm1158 = vcmp.gt.f32.partialorder %v1058, 0.0
      %vm1159 = vcmp.gt.f32.partialorder %v1061, 0.0
      %v1160 = vsel %vm1144, %v1002, %v1128
      %v1161 = vsel %vm1145, %v1005, %v1129
      %v1162 = vsel %vm1146, %v1010, %v1130
      %v1163 = vsel %vm1147, %v1013, %v1131
      %v1164 = vsel %vm1148, %v1018, %v1132
      %v1165 = vsel %vm1149, %v1021, %v1133
      %v1166 = vsel %vm1150, %v1026, %v1134
      %v1167 = vsel %vm1151, %v1029, %v1135
      %v1168 = vsel %vm1152, %v1034, %v1136
      %v1169 = vsel %vm1153, %v1037, %v1137
      %v1170 = vsel %vm1154, %v1042, %v1138
      %v1171 = vsel %vm1155, %v1045, %v1139
      %v1172 = vsel %vm1156, %v1050, %v1140
      %v1173 = vsel %vm1157, %v1053, %v1141
      %v1174 = vsel %vm1158, %v1058, %v1142
      %v1175 = vsel %vm1159, %v1061, %v1143
      %v1176 = vmul.f32 %v1160, 1.050701
      %v1177 = vmul.f32 %v1161, 1.050701
      %v1178 = vmul.f32 %v1162, 1.050701
      %v1179 = vmul.f32 %v1163, 1.050701
      %v1180 = vmul.f32 %v1164, 1.050701
      %v1181 = vmul.f32 %v1165, 1.050701
      %v1182 = vmul.f32 %v1166, 1.050701
      %v1183 = vmul.f32 %v1167, 1.050701
      %v1184 = vmul.f32 %v1168, 1.050701
      %v1185 = vmul.f32 %v1169, 1.050701
      %v1186 = vmul.f32 %v1170, 1.050701
      %v1187 = vmul.f32 %v1171, 1.050701
      %v1188 = vmul.f32 %v1172, 1.050701
      %v1189 = vmul.f32 %v1173, 1.050701
      %v1190 = vmul.f32 %v1174, 1.050701
      %v1191 = vmul.f32 %v1175, 1.050701
      %v1192 = vpack.c.bf16 %v1177, %v1176
      %v1193 = vpack.c.bf16 %v1179, %v1178
      %v1194 = vpack.c.bf16 %v1181, %v1180
      %v1195 = vpack.c.bf16 %v1183, %v1182
      %v1196 = vpack.c.bf16 %v1185, %v1184
      %v1197 = vpack.c.bf16 %v1187, %v1186
      %v1198 = vpack.c.bf16 %v1189, %v1188
      %v1199 = vpack.c.bf16 %v1191, %v1190
      %v1200 = vld [vmem:[%s4] sm:$0xf]
      %v1201 = vld [vmem:[%s4 + $0x4] sm:$0xf]
      %v1202 = vld [vmem:[%s4 + $0x8] sm:$0xf]
      %v1203 = vld [vmem:[%s4 + $0xc] sm:$0xf]
      %v1204 = vld [vmem:[%s4 + $0x10] sm:$0xf]
      %v1205 = vld [vmem:[%s4 + $0x14] sm:$0xf]
      %v1206 = vld [vmem:[%s4 + $0x18] sm:$0xf]
      %v1207 = vld [vmem:[%s4 + $0x1c] sm:$0xf]
      %v1208 = vld [vmem:[%s4 + $0x20] sm:$0xf]
      %v1209 = vld [vmem:[%s4 + $0x24] sm:$0xf]
      %v1210 = vld [vmem:[%s4 + $0x28] sm:$0xf]
      %v1211 = vld [vmem:[%s4 + $0x2c] sm:$0xf]
      %v1212 = vld [vmem:[%s4 + $0x30] sm:$0xf]
      %v1213 = vld [vmem:[%s4 + $0x34] sm:$0xf]
      %v1214 = vld [vmem:[%s4 + $0x38] sm:$0xf]
      %v1215 = vld [vmem:[%s4 + $0x3c] sm:$0xf]
      %v1232 = vunpack.c.l.b16 %v1200
      %v1233 = vunpack.c.l.b16 %v1201
      %v1234 = vunpack.c.l.b16 %v1202
      %v1235 = vunpack.c.l.b16 %v1203
      %v1236 = vunpack.c.l.b16 %v1204
      %v1237 = vunpack.c.l.b16 %v1205
      %v1238 = vunpack.c.l.b16 %v1206
      %v1239 = vunpack.c.l.b16 %v1207
      %v1240 = vunpack.c.l.b16 %v1208
      %v1241 = vunpack.c.l.b16 %v1209
      %v1242 = vunpack.c.l.b16 %v1210
      %v1243 = vunpack.c.l.b16 %v1211
      %v1244 = vunpack.c.l.b16 %v1212
      %v1245 = vunpack.c.l.b16 %v1213
      %v1246 = vunpack.c.l.b16 %v1214
      %v1247 = vunpack.c.l.b16 %v1215
      %v1248 = vpack.c.b16 %v1233, %v1232
      %v1249 = vpack.c.b16 %v1235, %v1234
      %v1250 = vpack.c.b16 %v1237, %v1236
      %v1251 = vpack.c.b16 %v1239, %v1238
      %v1252 = vpack.c.b16 %v1241, %v1240
      %v1253 = vpack.c.b16 %v1243, %v1242
      %v1254 = vpack.c.b16 %v1245, %v1244
      %v1255 = vpack.c.b16 %v1247, %v1246
      %1264 = vmatprep.subr.bf16.mxu0 0
      %1265 = vmatpush1.bf16.msra.mxu0 %v1248
      %1266 = vmatprep.subr.bf16.mxu0 0
      %1267 = vmatpush1.bf16.msra.mxu0 %v1249
      %1268 = vmatprep.subr.bf16.mxu0 0
      %1269 = vmatpush1.bf16.msra.mxu0 %v1250
      %1270 = vmatprep.subr.bf16.mxu0 0
      %1271 = vmatpush1.bf16.msra.mxu0 %v1251
      %1272 = vmatprep.subr.bf16.mxu0 0
      %1273 = vmatpush1.bf16.msra.mxu0 %v1252
      %1274 = vmatprep.subr.bf16.mxu0 0
      %1275 = vmatpush1.bf16.msra.mxu0 %v1253
      %1276 = vmatprep.subr.bf16.mxu0 0
      %1277 = vmatpush1.bf16.msra.mxu0 %v1254
      %1278 = vmatprep.subr.bf16.mxu0 0
      %1279 = vmatpush1.bf16.msra.mxu0 %v1255
      %1280 = vmatprep.subr.bf16.mxu0 0
      %1281 = vmatpush1.bf16.msra.mxu0 0
      %1282 = vmatprep.subr.bf16.mxu0 0
      %1283 = vmatpush1.bf16.msra.mxu0 0
      %1284 = vmatprep.subr.bf16.mxu0 0
      %1285 = vmatpush1.bf16.msra.mxu0 0
      %1286 = vmatprep.subr.bf16.mxu0 0
      %1287 = vmatpush1.bf16.msra.mxu0 0
      %1288 = vmatprep.subr.bf16.mxu0 0
      %1289 = vmatpush1.bf16.msra.mxu0 0
      %1290 = vmatprep.subr.bf16.mxu0 0
      %1291 = vmatpush1.bf16.msra.mxu0 0
      %1292 = vmatprep.subr.bf16.mxu0 0
      %1293 = vmatpush1.bf16.msra.mxu0 0
      %1294 = vmatprep.subr.bf16.mxu0 0
      %1295 = vmatpush1.bf16.msra.mxu0 0
      %1296 = vmatprep.mubr.bf16.mxu0 0
      %1297 = vmatmul.mubr.bf16.gmra.mrb[0].mxu0 %v1192
      %v1298 = vpop.f32.mrb[0].mxu0
      %v1299 = vadd.f32 0.0, %v1298
      %v1300 = vpop.f32.mrb[0].mxu0
      %v1301 = vpop.f32.mrb[0].mxu0
      %v1302 = vadd.f32 0.0, %v1301
      %v1303 = vpop.f32.mrb[0].mxu0
      %1304 = vmatprep.mubr.bf16.mxu0 0
      %1305 = vmatmul.mubr.bf16.gmra.mrb[0].mxu0 %v1193
      %v1306 = vpop.f32.mrb[0].mxu0
      %v1307 = vadd.f32 0.0, %v1306
      %v1308 = vpop.f32.mrb[0].mxu0
      %v1309 = vpop.f32.mrb[0].mxu0
      %v1310 = vadd.f32 0.0, %v1309
      %v1311 = vpop.f32.mrb[0].mxu0
      %1312 = vmatprep.mubr.bf16.mxu0 0
      %1313 = vmatmul.mubr.bf16.gmra.mrb[0].mxu0 %v1194
      %v1314 = vpop.f32.mrb[0].mxu0
      %v1315 = vadd.f32 0.0, %v1314
      %v1316 = vpop.f32.mrb[0].mxu0
      %v1317 = vpop.f32.mrb[0].mxu0
      %v1318 = vadd.f32 0.0, %v1317
      %v1319 = vpop.f32.mrb[0].mxu0
      %1320 = vmatprep.mubr.bf16.mxu0 0
      %1321 = vmatmul.mubr.bf16.gmra.mrb[0].mxu0 %v1195
      %v1322 = vpop.f32.mrb[0].mxu0
      %v1323 = vadd.f32 0.0, %v1322
      %v1324 = vpop.f32.mrb[0].mxu0
      %v1325 = vpop.f32.mrb[0].mxu0
      %v1326 = vadd.f32 0.0, %v1325
      %v1327 = vpop.f32.mrb[0].mxu0
      %1328 = vmatprep.mubr.bf16.mxu0 0
      %1329 = vmatmul.mubr.bf16.gmra.mrb[0].mxu0 %v1196
      %v1330 = vpop.f32.mrb[0].mxu0
      %v1331 = vadd.f32 0.0, %v1330
      %v1332 = vpop.f32.mrb[0].mxu0
      %v1333 = vpop.f32.mrb[0].mxu0
      %v1334 = vadd.f32 0.0, %v1333
      %v1335 = vpop.f32.mrb[0].mxu0
      %1336 = vmatprep.mubr.bf16.mxu0 0
      %1337 = vmatmul.mubr.bf16.gmra.mrb[0].mxu0 %v1197
      %v1338 = vpop.f32.mrb[0].mxu0
      %v1339 = vadd.f32 0.0, %v1338
      %v1340 = vpop.f32.mrb[0].mxu0
      %v1341 = vpop.f32.mrb[0].mxu0
      %v1342 = vadd.f32 0.0, %v1341
      %v1343 = vpop.f32.mrb[0].mxu0
      %1344 = vmatprep.mubr.bf16.mxu0 0
      %1345 = vmatmul.mubr.bf16.gmra.mrb[0].mxu0 %v1198
      %v1346 = vpop.f32.mrb[0].mxu0
      %v1347 = vadd.f32 0.0, %v1346
      %v1348 = vpop.f32.mrb[0].mxu0
      %v1349 = vpop.f32.mrb[0].mxu0
      %v1350 = vadd.f32 0.0, %v1349
      %v1351 = vpop.f32.mrb[0].mxu0
      %1352 = vmatprep.mubr.bf16.mxu0 0
      %1353 = vmatmul.mubr.bf16.gmra.mrb[0].mxu0 %v1199
      %v1354 = vpop.f32.mrb[0].mxu0
      %v1355 = vadd.f32 0.0, %v1354
      %v1356 = vpop.f32.mrb[0].mxu0
      %v1357 = vpop.f32.mrb[0].mxu0
      %v1358 = vadd.f32 0.0, %v1357
      %v1359 = vpop.f32.mrb[0].mxu0
      %1360 = vdwg.mxu0
      %v1361 = vmin.f32 %v1299, 0.0
      %v1362 = vmin.f32 %v1302, 0.0
      %v1363 = vmin.f32 %v1307, 0.0
      %v1364 = vmin.f32 %v1310, 0.0
      %v1365 = vmin.f32 %v1315, 0.0
      %v1366 = vmin.f32 %v1318, 0.0
      %v1367 = vmin.f32 %v1323, 0.0
      %v1368 = vmin.f32 %v1326, 0.0
      %v1369 = vmin.f32 %v1331, 0.0
      %v1370 = vmin.f32 %v1334, 0.0
      %v1371 = vmin.f32 %v1339, 0.0
      %v1372 = vmin.f32 %v1342, 0.0
      %v1373 = vmin.f32 %v1347, 0.0
      %v1374 = vmin.f32 %v1350, 0.0
      %v1375 = vmin.f32 %v1355, 0.0
      %v1376 = vmin.f32 %v1358, 0.0
      %v1377 = vmul.f32 %v1361, 1.442695
      %v1378 = vpow.pop %v1377
      %v1379 = vmul.f32 %v1362, 1.442695
      %v1380 = vpow.pop %v1379
      %v1381 = vmul.f32 %v1363, 1.442695
      %v1382 = vpow.pop %v1381
      %v1383 = vmul.f32 %v1364, 1.442695
      %v1384 = vpow.pop %v1383
      %v1385 = vmul.f32 %v1365, 1.442695
      %v1386 = vpow.pop %v1385
      %v1387 = vmul.f32 %v1366, 1.442695
      %v1388 = vpow.pop %v1387
      %v1389 = vmul.f32 %v1367, 1.442695
      %v1390 = vpow.pop %v1389
      %v1391 = vmul.f32 %v1368, 1.442695
      %v1392 = vpow.pop %v1391
      %v1393 = vmul.f32 %v1369, 1.442695
      %v1394 = vpow.pop %v1393
      %v1395 = vmul.f32 %v1370, 1.442695
      %v1396 = vpow.pop %v1395
      %v1397 = vmul.f32 %v1371, 1.442695
      %v1398 = vpow.pop %v1397
      %v1399 = vmul.f32 %v1372, 1.442695
      %v1400 = vpow.pop %v1399
      %v1401 = vmul.f32 %v1373, 1.442695
      %v1402 = vpow.pop %v1401
      %v1403 = vmul.f32 %v1374, 1.442695
      %v1404 = vpow.pop %v1403
      %v1405 = vmul.f32 %v1375, 1.442695
      %v1406 = vpow.pop %v1405
      %v1407 = vmul.f32 %v1376, 1.442695
      %v1408 = vpow.pop %v1407
      %v1409 = vsub.f32 %v1378, 1.0
      %v1410 = vsub.f32 %v1380, 1.0
      %v1411 = vsub.f32 %v1382, 1.0
      %v1412 = vsub.f32 %v1384, 1.0
      %v1413 = vsub.f32 %v1386, 1.0
      %v1414 = vsub.f32 %v1388, 1.0
      %v1415 = vsub.f32 %v1390, 1.0
      %v1416 = vsub.f32 %v1392, 1.0
      %v1417 = vsub.f32 %v1394, 1.0
      %v1418 = vsub.f32 %v1396, 1.0
      %v1419 = vsub.f32 %v1398, 1.0
      %v1420 = vsub.f32 %v1400, 1.0
      %v1421 = vsub.f32 %v1402, 1.0
      %v1422 = vsub.f32 %v1404, 1.0
      %v1423 = vsub.f32 %v1406, 1.0
      %v1424 = vsub.f32 %v1408, 1.0
      %v1425 = vmul.f32 %v1409, 1.6732632
      %v1426 = vmul.f32 %v1410, 1.6732632
      %v1427 = vmul.f32 %v1411, 1.6732632
      %v1428 = vmul.f32 %v1412, 1.6732632
      %v1429 = vmul.f32 %v1413, 1.6732632
      %v1430 = vmul.f32 %v1414, 1.6732632
      %v1431 = vmul.f32 %v1415, 1.6732632
      %v1432 = vmul.f32 %v1416, 1.6732632
      %v1433 = vmul.f32 %v1417, 1.6732632
      %v1434 = vmul.f32 %v1418, 1.6732632
      %v1435 = vmul.f32 %v1419, 1.6732632
      %v1436 = vmul.f32 %v1420, 1.6732632
      %v1437 = vmul.f32 %v1421, 1.6732632
      %v1438 = vmul.f32 %v1422, 1.6732632
      %v1439 = vmul.f32 %v1423, 1.6732632
      %v1440 = vmul.f32 %v1424, 1.6732632
      %vm1441 = vcmp.gt.f32.partialorder %v1299, 0.0
      %vm1442 = vcmp.gt.f32.partialorder %v1302, 0.0
      %vm1443 = vcmp.gt.f32.partialorder %v1307, 0.0
      %vm1444 = vcmp.gt.f32.partialorder %v1310, 0.0
      %vm1445 = vcmp.gt.f32.partialorder %v1315, 0.0
      %vm1446 = vcmp.gt.f32.partialorder %v1318, 0.0
      %vm1447 = vcmp.gt.f32.partialorder %v1323, 0.0
      %vm1448 = vcmp.gt.f32.partialorder %v1326, 0.0
      %vm1449 = vcmp.gt.f32.partialorder %v1331, 0.0
      %vm1450 = vcmp.gt.f32.partialorder %v1334, 0.0
      %vm1451 = vcmp.gt.f32.partialorder %v1339, 0.0
      %vm1452 = vcmp.gt.f32.partialorder %v1342, 0.0
      %vm1453 = vcmp.gt.f32.partialorder %v1347, 0.0
      %vm1454 = vcmp.gt.f32.partialorder %v1350, 0.0
      %vm1455 = vcmp.gt.f32.partialorder %v1355, 0.0
      %vm1456 = vcmp.gt.f32.partialorder %v1358, 0.0
      %v1457 = vsel %vm1441, %v1299, %v1425
      %v1458 = vsel %vm1442, %v1302, %v1426
      %v1459 = vsel %vm1443, %v1307, %v1427
      %v1460 = vsel %vm1444, %v1310, %v1428
      %v1461 = vsel %vm1445, %v1315, %v1429
      %v1462 = vsel %vm1446, %v1318, %v1430
      %v1463 = vsel %vm1447, %v1323, %v1431
      %v1464 = vsel %vm1448, %v1326, %v1432
      %v1465 = vsel %vm1449, %v1331, %v1433
      %v1466 = vsel %vm1450, %v1334, %v1434
      %v1467 = vsel %vm1451, %v1339, %v1435
      %v1468 = vsel %vm1452, %v1342, %v1436
      %v1469 = vsel %vm1453, %v1347, %v1437
      %v1470 = vsel %vm1454, %v1350, %v1438
      %v1471 = vsel %vm1455, %v1355, %v1439
      %v1472 = vsel %vm1456, %v1358, %v1440
      %v1473 = vmul.f32 %v1457, 1.050701
      %v1474 = vmul.f32 %v1458, 1.050701
      %v1475 = vmul.f32 %v1459, 1.050701
      %v1476 = vmul.f32 %v1460, 1.050701
      %v1477 = vmul.f32 %v1461, 1.050701
      %v1478 = vmul.f32 %v1462, 1.050701
      %v1479 = vmul.f32 %v1463, 1.050701
      %v1480 = vmul.f32 %v1464, 1.050701
      %v1481 = vmul.f32 %v1465, 1.050701
      %v1482 = vmul.f32 %v1466, 1.050701
      %v1483 = vmul.f32 %v1467, 1.050701
      %v1484 = vmul.f32 %v1468, 1.050701
      %v1485 = vmul.f32 %v1469, 1.050701
      %v1486 = vmul.f32 %v1470, 1.050701
      %v1487 = vmul.f32 %v1471, 1.050701
      %v1488 = vmul.f32 %v1472, 1.050701
      %v1489 = vpack.c.bf16 %v1474, %v1473
      %v1490 = vpack.c.bf16 %v1476, %v1475
      %v1491 = vpack.c.bf16 %v1478, %v1477
      %v1492 = vpack.c.bf16 %v1480, %v1479
      %v1493 = vpack.c.bf16 %v1482, %v1481
      %v1494 = vpack.c.bf16 %v1484, %v1483
      %v1495 = vpack.c.bf16 %v1486, %v1485
      %v1496 = vpack.c.bf16 %v1488, %v1487
      %v1497 = vunpack.c.l.bf16 %v337
      %v1498 = vunpack.c.l.bf16 %v338
      %v1499 = vunpack.c.l.bf16 %v339
      %v1500 = vunpack.c.l.bf16 %v340
      %v1501 = vunpack.c.l.bf16 %v341
      %v1502 = vunpack.c.l.bf16 %v342
      %v1503 = vunpack.c.l.bf16 %v343
      %v1504 = vunpack.c.l.bf16 %v344
      %v1505 = vunpack.c.l.bf16 %v345
      %v1506 = vunpack.c.l.bf16 %v346
      %v1507 = vunpack.c.l.bf16 %v347
      %v1508 = vunpack.c.l.bf16 %v348
      %v1509 = vunpack.c.l.bf16 %v349
      %v1510 = vunpack.c.l.bf16 %v350
      %v1511 = vunpack.c.l.bf16 %v351
      %v1512 = vunpack.c.l.bf16 %v352
      %v1513 = vmin.f32 %v1497, 0.0
      %v1514 = vmin.f32 %v1498, 0.0
      %v1515 = vmin.f32 %v1499, 0.0
      %v1516 = vmin.f32 %v1500, 0.0
      %v1517 = vmin.f32 %v1501, 0.0
      %v1518 = vmin.f32 %v1502, 0.0
      %v1519 = vmin.f32 %v1503, 0.0
      %v1520 = vmin.f32 %v1504, 0.0
      %v1521 = vmin.f32 %v1505, 0.0
      %v1522 = vmin.f32 %v1506, 0.0
      %v1523 = vmin.f32 %v1507, 0.0
      %v1524 = vmin.f32 %v1508, 0.0
      %v1525 = vmin.f32 %v1509, 0.0
      %v1526 = vmin.f32 %v1510, 0.0
      %v1527 = vmin.f32 %v1511, 0.0
      %v1528 = vmin.f32 %v1512, 0.0
      %v1529 = vmul.f32 %v1513, 1.442695
      %v1530 = vpow.pop %v1529
      %v1531 = vmul.f32 %v1514, 1.442695
      %v1532 = vpow.pop %v1531
      %v1533 = vmul.f32 %v1515, 1.442695
      %v1534 = vpow.pop %v1533
      %v1535 = vmul.f32 %v1516, 1.442695
      %v1536 = vpow.pop %v1535
      %v1537 = vmul.f32 %v1517, 1.442695
      %v1538 = vpow.pop %v1537
      %v1539 = vmul.f32 %v1518, 1.442695
      %v1540 = vpow.pop %v1539
      %v1541 = vmul.f32 %v1519, 1.442695
      %v1542 = vpow.pop %v1541
      %v1543 = vmul.f32 %v1520, 1.442695
      %v1544 = vpow.pop %v1543
      %v1545 = vmul.f32 %v1521, 1.442695
      %v1546 = vpow.pop %v1545
      %v1547 = vmul.f32 %v1522, 1.442695
      %v1548 = vpow.pop %v1547
      %v1549 = vmul.f32 %v1523, 1.442695
      %v1550 = vpow.pop %v1549
      %v1551 = vmul.f32 %v1524, 1.442695
      %v1552 = vpow.pop %v1551
      %v1553 = vmul.f32 %v1525, 1.442695
      %v1554 = vpow.pop %v1553
      %v1555 = vmul.f32 %v1526, 1.442695
      %v1556 = vpow.pop %v1555
      %v1557 = vmul.f32 %v1527, 1.442695
      %v1558 = vpow.pop %v1557
      %v1559 = vmul.f32 %v1528, 1.442695
      %v1560 = vpow.pop %v1559
      %v1561 = vsub.f32 %v1530, 1.0
      %v1562 = vsub.f32 %v1532, 1.0
      %v1563 = vsub.f32 %v1534, 1.0
      %v1564 = vsub.f32 %v1536, 1.0
      %v1565 = vsub.f32 %v1538, 1.0
      %v1566 = vsub.f32 %v1540, 1.0
      %v1567 = vsub.f32 %v1542, 1.0
      %v1568 = vsub.f32 %v1544, 1.0
      %v1569 = vsub.f32 %v1546, 1.0
      %v1570 = vsub.f32 %v1548, 1.0
      %v1571 = vsub.f32 %v1550, 1.0
      %v1572 = vsub.f32 %v1552, 1.0
      %v1573 = vsub.f32 %v1554, 1.0
      %v1574 = vsub.f32 %v1556, 1.0
      %v1575 = vsub.f32 %v1558, 1.0
      %v1576 = vsub.f32 %v1560, 1.0
      %v1577 = vmul.f32 %v1561, 1.6732632
      %v1578 = vmul.f32 %v1562, 1.6732632
      %v1579 = vmul.f32 %v1563, 1.6732632
      %v1580 = vmul.f32 %v1564, 1.6732632
      %v1581 = vmul.f32 %v1565, 1.6732632
      %v1582 = vmul.f32 %v1566, 1.6732632
      %v1583 = vmul.f32 %v1567, 1.6732632
      %v1584 = vmul.f32 %v1568, 1.6732632
      %v1585 = vmul.f32 %v1569, 1.6732632
      %v1586 = vmul.f32 %v1570, 1.6732632
      %v1587 = vmul.f32 %v1571, 1.6732632
      %v1588 = vmul.f32 %v1572, 1.6732632
      %v1589 = vmul.f32 %v1573, 1.6732632
      %v1590 = vmul.f32 %v1574, 1.6732632
      %v1591 = vmul.f32 %v1575, 1.6732632
      %v1592 = vmul.f32 %v1576, 1.6732632
      %vm1593 = vcmp.gt.f32.partialorder %v1497, 0.0
      %vm1594 = vcmp.gt.f32.partialorder %v1498, 0.0
      %vm1595 = vcmp.gt.f32.partialorder %v1499, 0.0
      %vm1596 = vcmp.gt.f32.partialorder %v1500, 0.0
      %vm1597 = vcmp.gt.f32.partialorder %v1501, 0.0
      %vm1598 = vcmp.gt.f32.partialorder %v1502, 0.0
      %vm1599 = vcmp.gt.f32.partialorder %v1503, 0.0
      %vm1600 = vcmp.gt.f32.partialorder %v1504, 0.0
      %vm1601 = vcmp.gt.f32.partialorder %v1505, 0.0
      %vm1602 = vcmp.gt.f32.partialorder %v1506, 0.0
      %vm1603 = vcmp.gt.f32.partialorder %v1507, 0.0
      %vm1604 = vcmp.gt.f32.partialorder %v1508, 0.0
      %vm1605 = vcmp.gt.f32.partialorder %v1509, 0.0
      %vm1606 = vcmp.gt.f32.partialorder %v1510, 0.0
      %vm1607 = vcmp.gt.f32.partialorder %v1511, 0.0
      %vm1608 = vcmp.gt.f32.partialorder %v1512, 0.0
      %v1609 = vsel %vm1593, %v1497, %v1577
      %v1610 = vsel %vm1594, %v1498, %v1578
      %v1611 = vsel %vm1595, %v1499, %v1579
      %v1612 = vsel %vm1596, %v1500, %v1580
      %v1613 = vsel %vm1597, %v1501, %v1581
      %v1614 = vsel %vm1598, %v1502, %v1582
      %v1615 = vsel %vm1599, %v1503, %v1583
      %v1616 = vsel %vm1600, %v1504, %v1584
      %v1617 = vsel %vm1601, %v1505, %v1585
      %v1618 = vsel %vm1602, %v1506, %v1586
      %v1619 = vsel %vm1603, %v1507, %v1587
      %v1620 = vsel %vm1604, %v1508, %v1588
      %v1621 = vsel %vm1605, %v1509, %v1589
      %v1622 = vsel %vm1606, %v1510, %v1590
      %v1623 = vsel %vm1607, %v1511, %v1591
      %v1624 = vsel %vm1608, %v1512, %v1592
      %v1625 = vmul.f32 %v1609, 1.050701
      %v1626 = vmul.f32 %v1610, 1.050701
      %v1627 = vmul.f32 %v1611, 1.050701
      %v1628 = vmul.f32 %v1612, 1.050701
      %v1629 = vmul.f32 %v1613, 1.050701
      %v1630 = vmul.f32 %v1614, 1.050701
      %v1631 = vmul.f32 %v1615, 1.050701
      %v1632 = vmul.f32 %v1616, 1.050701
      %v1633 = vmul.f32 %v1617, 1.050701
      %v1634 = vmul.f32 %v1618, 1.050701
      %v1635 = vmul.f32 %v1619, 1.050701
      %v1636 = vmul.f32 %v1620, 1.050701
      %v1637 = vmul.f32 %v1621, 1.050701
      %v1638 = vmul.f32 %v1622, 1.050701
      %v1639 = vmul.f32 %v1623, 1.050701
      %v1640 = vmul.f32 %v1624, 1.050701
      %v1641 = vpack.c.bf16 %v1626, %v1625
      %v1642 = vpack.c.bf16 %v1628, %v1627
      %v1643 = vpack.c.bf16 %v1630, %v1629
      %v1644 = vpack.c.bf16 %v1632, %v1631
      %v1645 = vpack.c.bf16 %v1634, %v1633
      %v1646 = vpack.c.bf16 %v1636, %v1635
      %v1647 = vpack.c.bf16 %v1638, %v1637
      %v1648 = vpack.c.bf16 %v1640, %v1639
      %v1649 = vld [vmem:[%s5] sm:$0xf]
      %v1650 = vld [vmem:[%s5 + $0x4] sm:$0xf]
      %v1651 = vld [vmem:[%s5 + $0x8] sm:$0xf]
      %v1652 = vld [vmem:[%s5 + $0xc] sm:$0xf]
      %v1653 = vld [vmem:[%s5 + $0x10] sm:$0xf]
      %v1654 = vld [vmem:[%s5 + $0x14] sm:$0xf]
      %v1655 = vld [vmem:[%s5 + $0x18] sm:$0xf]
      %v1656 = vld [vmem:[%s5 + $0x1c] sm:$0xf]
      %v1657 = vld [vmem:[%s5 + $0x20] sm:$0xf]
      %v1658 = vld [vmem:[%s5 + $0x24] sm:$0xf]
      %v1659 = vld [vmem:[%s5 + $0x28] sm:$0xf]
      %v1660 = vld [vmem:[%s5 + $0x2c] sm:$0xf]
      %v1661 = vld [vmem:[%s5 + $0x30] sm:$0xf]
      %v1662 = vld [vmem:[%s5 + $0x34] sm:$0xf]
      %v1663 = vld [vmem:[%s5 + $0x38] sm:$0xf]
      %v1664 = vld [vmem:[%s5 + $0x3c] sm:$0xf]
      %v1665 = vld [vmem:[%s6] sm:$0xf]
      %v1666 = vld [vmem:[%s6 + $0x4] sm:$0xf]
      %v1667 = vld [vmem:[%s6 + $0x8] sm:$0xf]
      %v1668 = vld [vmem:[%s6 + $0xc] sm:$0xf]
      %v1673 = vunpack.c.l.b16 %v1665
      %v1674 = vunpack.c.l.b16 %v1666
      %v1675 = vunpack.c.l.b16 %v1667
      %v1676 = vunpack.c.l.b16 %v1668
      %v1677 = vpack.c.b16 %v1674, %v1673
      %v1678 = vpack.c.b16 %v1676, %v1675
      %v1682 = vsel %vm429, %v1641, 0
      %v1685 = vsel %vm429, %v1642, 0
      %v1688 = vsel %vm429, %v1643, 0
      %v1691 = vsel %vm429, %v1644, 0
      %v1694 = vsel %vm429, %v1645, 0
      %v1697 = vsel %vm429, %v1646, 0
      %v1700 = vsel %vm429, %v1647, 0
      %v1703 = vsel %vm429, %v1648, 0
      %1705 = vmatprep.subr.bf16.mxu0 0
      %1706 = vmatpush1.bf16.msra.mxu0 %v1677
      %1707 = vmatprep.subr.bf16.mxu0 0
      %1708 = vmatpush1.bf16.msra.mxu0 %v1678
      %1709 = vmatprep.subr.bf16.mxu0 0
      %1710 = vmatpush1.bf16.msra.mxu0 0
      %1711 = vmatprep.subr.bf16.mxu0 0
      %1712 = vmatpush1.bf16.msra.mxu0 0
      %1713 = vmatprep.subr.bf16.mxu0 0
      %1714 = vmatpush1.bf16.msra.mxu0 0
      %1715 = vmatprep.subr.bf16.mxu0 0
      %1716 = vmatpush1.bf16.msra.mxu0 0
      %1717 = vmatprep.subr.bf16.mxu0 0
      %1718 = vmatpush1.bf16.msra.mxu0 0
      %1719 = vmatprep.subr.bf16.mxu0 0
      %1720 = vmatpush1.bf16.msra.mxu0 0
      %1721 = vmatprep.subr.bf16.mxu0 0
      %1722 = vmatpush1.bf16.msra.mxu0 0
      %1723 = vmatprep.subr.bf16.mxu0 0
      %1724 = vmatpush1.bf16.msra.mxu0 0
      %1725 = vmatprep.subr.bf16.mxu0 0
      %1726 = vmatpush1.bf16.msra.mxu0 0
      %1727 = vmatprep.subr.bf16.mxu0 0
      %1728 = vmatpush1.bf16.msra.mxu0 0
      %1729 = vmatprep.subr.bf16.mxu0 0
      %1730 = vmatpush1.bf16.msra.mxu0 0
      %1731 = vmatprep.subr.bf16.mxu0 0
      %1732 = vmatpush1.bf16.msra.mxu0 0
      %1733 = vmatprep.subr.bf16.mxu0 0
      %1734 = vmatpush1.bf16.msra.mxu0 0
      %1735 = vmatprep.subr.bf16.mxu0 0
      %1736 = vmatpush1.bf16.msra.mxu0 0
      %1737 = vmatprep.mubr.bf16.mxu0 0
      %1738 = vmatmul.mubr.bf16.gmra.mrb[0].mxu0 %v1682
      %v1739 = vpop.f32.mrb[0].mxu0
      %v1740 = vadd.f32 0.0, %v1739
      %v1741 = vpop.f32.mrb[0].mxu0
      %v1742 = vpop.f32.mrb[0].mxu0
      %v1743 = vadd.f32 0.0, %v1742
      %v1744 = vpop.f32.mrb[0].mxu0
      %1745 = vmatprep.mubr.bf16.mxu0 0
      %1746 = vmatmul.mubr.bf16.gmra.mrb[0].mxu0 %v1685
      %v1747 = vpop.f32.mrb[0].mxu0
      %v1748 = vadd.f32 0.0, %v1747
      %v1749 = vpop.f32.mrb[0].mxu0
      %v1750 = vpop.f32.mrb[0].mxu0
      %v1751 = vadd.f32 0.0, %v1750
      %v1752 = vpop.f32.mrb[0].mxu0
      %1753 = vmatprep.mubr.bf16.mxu0 0
      %1754 = vmatmul.mubr.bf16.gmra.mrb[0].mxu0 %v1688
      %v1755 = vpop.f32.mrb[0].mxu0
      %v1756 = vadd.f32 0.0, %v1755
      %v1757 = vpop.f32.mrb[0].mxu0
      %v1758 = vpop.f32.mrb[0].mxu0
      %v1759 = vadd.f32 0.0, %v1758
      %v1760 = vpop.f32.mrb[0].mxu0
      %1761 = vmatprep.mubr.bf16.mxu0 0
      %1762 = vmatmul.mubr.bf16.gmra.mrb[0].mxu0 %v1691
      %v1763 = vpop.f32.mrb[0].mxu0
      %v1764 = vadd.f32 0.0, %v1763
      %v1765 = vpop.f32.mrb[0].mxu0
      %v1766 = vpop.f32.mrb[0].mxu0
      %v1767 = vadd.f32 0.0, %v1766
      %v1768 = vpop.f32.mrb[0].mxu0
      %1769 = vmatprep.mubr.bf16.mxu0 0
      %1770 = vmatmul.mubr.bf16.gmra.mrb[0].mxu0 %v1694
      %v1771 = vpop.f32.mrb[0].mxu0
      %v1772 = vadd.f32 0.0, %v1771
      %v1773 = vpop.f32.mrb[0].mxu0
      %v1774 = vpop.f32.mrb[0].mxu0
      %v1775 = vadd.f32 0.0, %v1774
      %v1776 = vpop.f32.mrb[0].mxu0
      %1777 = vmatprep.mubr.bf16.mxu0 0
      %1778 = vmatmul.mubr.bf16.gmra.mrb[0].mxu0 %v1697
      %v1779 = vpop.f32.mrb[0].mxu0
      %v1780 = vadd.f32 0.0, %v1779
      %v1781 = vpop.f32.mrb[0].mxu0
      %v1782 = vpop.f32.mrb[0].mxu0
      %v1783 = vadd.f32 0.0, %v1782
      %v1784 = vpop.f32.mrb[0].mxu0
      %1785 = vmatprep.mubr.bf16.mxu0 0
      %1786 = vmatmul.mubr.bf16.gmra.mrb[0].mxu0 %v1700
      %v1787 = vpop.f32.mrb[0].mxu0
      %v1788 = vadd.f32 0.0, %v1787
      %v1789 = vpop.f32.mrb[0].mxu0
      %v1790 = vpop.f32.mrb[0].mxu0
      %v1791 = vadd.f32 0.0, %v1790
      %v1792 = vpop.f32.mrb[0].mxu0
      %1793 = vmatprep.mubr.bf16.mxu0 0
      %1794 = vmatmul.mubr.bf16.gmra.mrb[0].mxu0 %v1703
      %v1795 = vpop.f32.mrb[0].mxu0
      %v1796 = vadd.f32 0.0, %v1795
      %v1797 = vpop.f32.mrb[0].mxu0
      %v1798 = vpop.f32.mrb[0].mxu0
      %v1799 = vadd.f32 0.0, %v1798
      %v1800 = vpop.f32.mrb[0].mxu0
      %1801 = vdwg.mxu0
      %v1818 = vunpack.c.l.b16 %v1649
      %v1819 = vunpack.c.l.b16 %v1650
      %v1820 = vunpack.c.l.b16 %v1651
      %v1821 = vunpack.c.l.b16 %v1652
      %v1822 = vunpack.c.l.b16 %v1653
      %v1823 = vunpack.c.l.b16 %v1654
      %v1824 = vunpack.c.l.b16 %v1655
      %v1825 = vunpack.c.l.b16 %v1656
      %v1826 = vunpack.c.l.b16 %v1657
      %v1827 = vunpack.c.l.b16 %v1658
      %v1828 = vunpack.c.l.b16 %v1659
      %v1829 = vunpack.c.l.b16 %v1660
      %v1830 = vunpack.c.l.b16 %v1661
      %v1831 = vunpack.c.l.b16 %v1662
      %v1832 = vunpack.c.l.b16 %v1663
      %v1833 = vunpack.c.l.b16 %v1664
      %v1834 = vpack.c.b16 %v1819, %v1818
      %v1835 = vpack.c.b16 %v1821, %v1820
      %v1836 = vpack.c.b16 %v1823, %v1822
      %v1837 = vpack.c.b16 %v1825, %v1824
      %v1838 = vpack.c.b16 %v1827, %v1826
      %v1839 = vpack.c.b16 %v1829, %v1828
      %v1840 = vpack.c.b16 %v1831, %v1830
      %v1841 = vpack.c.b16 %v1833, %v1832
      %1850 = vmatprep.subr.bf16.mxu0 0
      %1851 = vmatpush1.bf16.msra.mxu0 %v1834
      %1852 = vmatprep.subr.bf16.mxu0 0
      %1853 = vmatpush1.bf16.msra.mxu0 %v1835
      %1854 = vmatprep.subr.bf16.mxu0 0
      %1855 = vmatpush1.bf16.msra.mxu0 %v1836
      %1856 = vmatprep.subr.bf16.mxu0 0
      %1857 = vmatpush1.bf16.msra.mxu0 %v1837
      %1858 = vmatprep.subr.bf16.mxu0 0
      %1859 = vmatpush1.bf16.msra.mxu0 %v1838
      %1860 = vmatprep.subr.bf16.mxu0 0
      %1861 = vmatpush1.bf16.msra.mxu0 %v1839
      %1862 = vmatprep.subr.bf16.mxu0 0
      %1863 = vmatpush1.bf16.msra.mxu0 %v1840
      %1864 = vmatprep.subr.bf16.mxu0 0
      %1865 = vmatpush1.bf16.msra.mxu0 %v1841
      %1866 = vmatprep.subr.bf16.mxu0 0
      %1867 = vmatpush1.bf16.msra.mxu0 0
      %1868 = vmatprep.subr.bf16.mxu0 0
      %1869 = vmatpush1.bf16.msra.mxu0 0
      %1870 = vmatprep.subr.bf16.mxu0 0
      %1871 = vmatpush1.bf16.msra.mxu0 0
      %1872 = vmatprep.subr.bf16.mxu0 0
      %1873 = vmatpush1.bf16.msra.mxu0 0
      %1874 = vmatprep.subr.bf16.mxu0 0
      %1875 = vmatpush1.bf16.msra.mxu0 0
      %1876 = vmatprep.subr.bf16.mxu0 0
      %1877 = vmatpush1.bf16.msra.mxu0 0
      %1878 = vmatprep.subr.bf16.mxu0 0
      %1879 = vmatpush1.bf16.msra.mxu0 0
      %1880 = vmatprep.subr.bf16.mxu0 0
      %1881 = vmatpush1.bf16.msra.mxu0 0
      %1882 = vmatprep.mubr.bf16.mxu0 0
      %1883 = vmatmul.mubr.bf16.gmra.mrb[0].mxu0 %v1489
      %v1884 = vpop.f32.mrb[0].mxu0
      %v1885 = vadd.f32 %v1740, %v1884
      %v1886 = vpop.f32.mrb[0].mxu0
      %v1887 = vpop.f32.mrb[0].mxu0
      %v1888 = vadd.f32 %v1743, %v1887
      %v1889 = vpop.f32.mrb[0].mxu0
      %1890 = vmatprep.mubr.bf16.mxu0 0
      %1891 = vmatmul.mubr.bf16.gmra.mrb[0].mxu0 %v1490
      %v1892 = vpop.f32.mrb[0].mxu0
      %v1893 = vadd.f32 %v1748, %v1892
      %v1894 = vpop.f32.mrb[0].mxu0
      %v1895 = vpop.f32.mrb[0].mxu0
      %v1896 = vadd.f32 %v1751, %v1895
      %v1897 = vpop.f32.mrb[0].mxu0
      %1898 = vmatprep.mubr.bf16.mxu0 0
      %1899 = vmatmul.mubr.bf16.gmra.mrb[0].mxu0 %v1491
      %v1900 = vpop.f32.mrb[0].mxu0
      %v1901 = vadd.f32 %v1756, %v1900
      %v1902 = vpop.f32.mrb[0].mxu0
      %v1903 = vpop.f32.mrb[0].mxu0
      %v1904 = vadd.f32 %v1759, %v1903
      %v1905 = vpop.f32.mrb[0].mxu0
      %1906 = vmatprep.mubr.bf16.mxu0 0
      %1907 = vmatmul.mubr.bf16.gmra.mrb[0].mxu0 %v1492
      %v1908 = vpop.f32.mrb[0].mxu0
      %v1909 = vadd.f32 %v1764, %v1908
      %v1910 = vpop.f32.mrb[0].mxu0
      %v1911 = vpop.f32.mrb[0].mxu0
      %v1912 = vadd.f32 %v1767, %v1911
      %v1913 = vpop.f32.mrb[0].mxu0
      %1914 = vmatprep.mubr.bf16.mxu0 0
      %1915 = vmatmul.mubr.bf16.gmra.mrb[0].mxu0 %v1493
      %v1916 = vpop.f32.mrb[0].mxu0
      %v1917 = vadd.f32 %v1772, %v1916
      %v1918 = vpop.f32.mrb[0].mxu0
      %v1919 = vpop.f32.mrb[0].mxu0
      %v1920 = vadd.f32 %v1775, %v1919
      %v1921 = vpop.f32.mrb[0].mxu0
      %1922 = vmatprep.mubr.bf16.mxu0 0
      %1923 = vmatmul.mubr.bf16.gmra.mrb[0].mxu0 %v1494
      %v1924 = vpop.f32.mrb[0].mxu0
      %v1925 = vadd.f32 %v1780, %v1924
      %v1926 = vpop.f32.mrb[0].mxu0
      %v1927 = vpop.f32.mrb[0].mxu0
      %v1928 = vadd.f32 %v1783, %v1927
      %v1929 = vpop.f32.mrb[0].mxu0
      %1930 = vmatprep.mubr.bf16.mxu0 0
      %1931 = vmatmul.mubr.bf16.gmra.mrb[0].mxu0 %v1495
      %v1932 = vpop.f32.mrb[0].mxu0
      %v1933 = vadd.f32 %v1788, %v1932
      %v1934 = vpop.f32.mrb[0].mxu0
      %v1935 = vpop.f32.mrb[0].mxu0
      %v1936 = vadd.f32 %v1791, %v1935
      %v1937 = vpop.f32.mrb[0].mxu0
      %1938 = vmatprep.mubr.bf16.mxu0 0
      %1939 = vmatmul.mubr.bf16.gmra.mrb[0].mxu0 %v1496
      %v1940 = vpop.f32.mrb[0].mxu0
      %v1941 = vadd.f32 %v1796, %v1940
      %v1942 = vpop.f32.mrb[0].mxu0
      %v1943 = vpop.f32.mrb[0].mxu0
      %v1944 = vadd.f32 %v1799, %v1943
      %v1945 = vpop.f32.mrb[0].mxu0
      %1946 = vdwg.mxu0
      %v1947 = vmin.f32 %v1885, 0.0
      %v1948 = vmin.f32 %v1888, 0.0
      %v1949 = vmin.f32 %v1893, 0.0
      %v1950 = vmin.f32 %v1896, 0.0
      %v1951 = vmin.f32 %v1901, 0.0
      %v1952 = vmin.f32 %v1904, 0.0
      %v1953 = vmin.f32 %v1909, 0.0
      %v1954 = vmin.f32 %v1912, 0.0
      %v1955 = vmin.f32 %v1917, 0.0
      %v1956 = vmin.f32 %v1920, 0.0
      %v1957 = vmin.f32 %v1925, 0.0
      %v1958 = vmin.f32 %v1928, 0.0
      %v1959 = vmin.f32 %v1933, 0.0
      %v1960 = vmin.f32 %v1936, 0.0
      %v1961 = vmin.f32 %v1941, 0.0
      %v1962 = vmin.f32 %v1944, 0.0
      %v1963 = vmul.f32 %v1947, 1.442695
      %v1964 = vpow.pop %v1963
      %v1965 = vmul.f32 %v1948, 1.442695
      %v1966 = vpow.pop %v1965
      %v1967 = vmul.f32 %v1949, 1.442695
      %v1968 = vpow.pop %v1967
      %v1969 = vmul.f32 %v1950, 1.442695
      %v1970 = vpow.pop %v1969
      %v1971 = vmul.f32 %v1951, 1.442695
      %v1972 = vpow.pop %v1971
      %v1973 = vmul.f32 %v1952, 1.442695
      %v1974 = vpow.pop %v1973
      %v1975 = vmul.f32 %v1953, 1.442695
      %v1976 = vpow.pop %v1975
      %v1977 = vmul.f32 %v1954, 1.442695
      %v1978 = vpow.pop %v1977
      %v1979 = vmul.f32 %v1955, 1.442695
      %v1980 = vpow.pop %v1979
      %v1981 = vmul.f32 %v1956, 1.442695
      %v1982 = vpow.pop %v1981
      %v1983 = vmul.f32 %v1957, 1.442695
      %v1984 = vpow.pop %v1983
      %v1985 = vmul.f32 %v1958, 1.442695
      %v1986 = vpow.pop %v1985
      %v1987 = vmul.f32 %v1959, 1.442695
      %v1988 = vpow.pop %v1987
      %v1989 = vmul.f32 %v1960, 1.442695
      %v1990 = vpow.pop %v1989
      %v1991 = vmul.f32 %v1961, 1.442695
      %v1992 = vpow.pop %v1991
      %v1993 = vmul.f32 %v1962, 1.442695
      %v1994 = vpow.pop %v1993
      %v1995 = vsub.f32 %v1964, 1.0
      %v1996 = vsub.f32 %v1966, 1.0
      %v1997 = vsub.f32 %v1968, 1.0
      %v1998 = vsub.f32 %v1970, 1.0
      %v1999 = vsub.f32 %v1972, 1.0
      %v2000 = vsub.f32 %v1974, 1.0
      %v2001 = vsub.f32 %v1976, 1.0
      %v2002 = vsub.f32 %v1978, 1.0
      %v2003 = vsub.f32 %v1980, 1.0
      %v2004 = vsub.f32 %v1982, 1.0
      %v2005 = vsub.f32 %v1984, 1.0
      %v2006 = vsub.f32 %v1986, 1.0
      %v2007 = vsub.f32 %v1988, 1.0
      %v2008 = vsub.f32 %v1990, 1.0
      %v2009 = vsub.f32 %v1992, 1.0
      %v2010 = vsub.f32 %v1994, 1.0
      %v2011 = vmul.f32 %v1995, 1.6732632
      %v2012 = vmul.f32 %v1996, 1.6732632
      %v2013 = vmul.f32 %v1997, 1.6732632
      %v2014 = vmul.f32 %v1998, 1.6732632
      %v2015 = vmul.f32 %v1999, 1.6732632
      %v2016 = vmul.f32 %v2000, 1.6732632
      %v2017 = vmul.f32 %v2001, 1.6732632
      %v2018 = vmul.f32 %v2002, 1.6732632
      %v2019 = vmul.f32 %v2003, 1.6732632
      %v2020 = vmul.f32 %v2004, 1.6732632
      %v2021 = vmul.f32 %v2005, 1.6732632
      %v2022 = vmul.f32 %v2006, 1.6732632
      %v2023 = vmul.f32 %v2007, 1.6732632
      %v2024 = vmul.f32 %v2008, 1.6732632
      %v2025 = vmul.f32 %v2009, 1.6732632
      %v2026 = vmul.f32 %v2010, 1.6732632
      %vm2027 = vcmp.gt.f32.partialorder %v1885, 0.0
      %vm2028 = vcmp.gt.f32.partialorder %v1888, 0.0
      %vm2029 = vcmp.gt.f32.partialorder %v1893, 0.0
      %vm2030 = vcmp.gt.f32.partialorder %v1896, 0.0
      %vm2031 = vcmp.gt.f32.partialorder %v1901, 0.0
      %vm2032 = vcmp.gt.f32.partialorder %v1904, 0.0
      %vm2033 = vcmp.gt.f32.partialorder %v1909, 0.0
      %vm2034 = vcmp.gt.f32.partialorder %v1912, 0.0
      %vm2035 = vcmp.gt.f32.partialorder %v1917, 0.0
      %vm2036 = vcmp.gt.f32.partialorder %v1920, 0.0
      %vm2037 = vcmp.gt.f32.partialorder %v1925, 0.0
      %vm2038 = vcmp.gt.f32.partialorder %v1928, 0.0
      %vm2039 = vcmp.gt.f32.partialorder %v1933, 0.0
      %vm2040 = vcmp.gt.f32.partialorder %v1936, 0.0
      %vm2041 = vcmp.gt.f32.partialorder %v1941, 0.0
      %vm2042 = vcmp.gt.f32.partialorder %v1944, 0.0
      %v2043 = vsel %vm2027, %v1885, %v2011
      %v2044 = vsel %vm2028, %v1888, %v2012
      %v2045 = vsel %vm2029, %v1893, %v2013
      %v2046 = vsel %vm2030, %v1896, %v2014
      %v2047 = vsel %vm2031, %v1901, %v2015
      %v2048 = vsel %vm2032, %v1904, %v2016
      %v2049 = vsel %vm2033, %v1909, %v2017
      %v2050 = vsel %vm2034, %v1912, %v2018
      %v2051 = vsel %vm2035, %v1917, %v2019
      %v2052 = vsel %vm2036, %v1920, %v2020
      %v2053 = vsel %vm2037, %v1925, %v2021
      %v2054 = vsel %vm2038, %v1928, %v2022
      %v2055 = vsel %vm2039, %v1933, %v2023
      %v2056 = vsel %vm2040, %v1936, %v2024
      %v2057 = vsel %vm2041, %v1941, %v2025
      %v2058 = vsel %vm2042, %v1944, %v2026
      %v2059 = vmul.f32 %v2043, 1.050701
      %v2060 = vmul.f32 %v2044, 1.050701
      %v2061 = vmul.f32 %v2045, 1.050701
      %v2062 = vmul.f32 %v2046, 1.050701
      %v2063 = vmul.f32 %v2047, 1.050701
      %v2064 = vmul.f32 %v2048, 1.050701
      %v2065 = vmul.f32 %v2049, 1.050701
      %v2066 = vmul.f32 %v2050, 1.050701
      %v2067 = vmul.f32 %v2051, 1.050701
      %v2068 = vmul.f32 %v2052, 1.050701
      %v2069 = vmul.f32 %v2053, 1.050701
      %v2070 = vmul.f32 %v2054, 1.050701
      %v2071 = vmul.f32 %v2055, 1.050701
      %v2072 = vmul.f32 %v2056, 1.050701
      %v2073 = vmul.f32 %v2057, 1.050701
      %v2074 = vmul.f32 %v2058, 1.050701
      %v2075 = vpack.c.bf16 %v2060, %v2059
      %v2076 = vpack.c.bf16 %v2062, %v2061
      %v2077 = vpack.c.bf16 %v2064, %v2063
      %v2078 = vpack.c.bf16 %v2066, %v2065
      %v2079 = vpack.c.bf16 %v2068, %v2067
      %v2080 = vpack.c.bf16 %v2070, %v2069
      %v2081 = vpack.c.bf16 %v2072, %v2071
      %v2082 = vpack.c.bf16 %v2074, %v2073
      %v2083 = vld [vmem:[%s7] sm:$0xf]
      %v2084 = vld [vmem:[%s7 + $0x4] sm:$0xf]
      %v2085 = vld [vmem:[%s7 + $0x8] sm:$0xf]
      %v2086 = vld [vmem:[%s7 + $0xc] sm:$0xf]
      %v2087 = vld [vmem:[%s7 + $0x10] sm:$0xf]
      %v2088 = vld [vmem:[%s7 + $0x14] sm:$0xf]
      %v2089 = vld [vmem:[%s7 + $0x18] sm:$0xf]
      %v2090 = vld [vmem:[%s7 + $0x1c] sm:$0xf]
      %v2091 = vld [vmem:[%s7 + $0x20] sm:$0xf]
      %v2092 = vld [vmem:[%s7 + $0x24] sm:$0xf]
      %v2093 = vld [vmem:[%s7 + $0x28] sm:$0xf]
      %v2094 = vld [vmem:[%s7 + $0x2c] sm:$0xf]
      %v2095 = vld [vmem:[%s7 + $0x30] sm:$0xf]
      %v2096 = vld [vmem:[%s7 + $0x34] sm:$0xf]
      %v2097 = vld [vmem:[%s7 + $0x38] sm:$0xf]
      %v2098 = vld [vmem:[%s7 + $0x3c] sm:$0xf]
      %v2099 = vld [vmem:[%s8] sm:$0x1]
      %v2101 = vlaneseq
      %v2102 = vshrl.u32 %v2101, 7
      %v2103 = vsub.s32 0, %v2102
      %v2104 = vrot.slane %v2099, %v2103
      %v2122 = vunpack.c.l.b16 %v2083
      %v2123 = vunpack.c.l.b16 %v2084
      %v2124 = vunpack.c.l.b16 %v2085
      %v2125 = vunpack.c.l.b16 %v2086
      %v2126 = vunpack.c.l.b16 %v2087
      %v2127 = vunpack.c.l.b16 %v2088
      %v2128 = vunpack.c.l.b16 %v2089
      %v2129 = vunpack.c.l.b16 %v2090
      %v2130 = vunpack.c.l.b16 %v2091
      %v2131 = vunpack.c.l.b16 %v2092
      %v2132 = vunpack.c.l.b16 %v2093
      %v2133 = vunpack.c.l.b16 %v2094
      %v2134 = vunpack.c.l.b16 %v2095
      %v2135 = vunpack.c.l.b16 %v2096
      %v2136 = vunpack.c.l.b16 %v2097
      %v2137 = vunpack.c.l.b16 %v2098
      %v2138 = vpack.c.b16 %v2123, %v2122
      %v2139 = vpack.c.b16 %v2125, %v2124
      %v2140 = vpack.c.b16 %v2127, %v2126
      %v2141 = vpack.c.b16 %v2129, %v2128
      %v2142 = vpack.c.b16 %v2131, %v2130
      %v2143 = vpack.c.b16 %v2133, %v2132
      %v2144 = vpack.c.b16 %v2135, %v2134
      %v2145 = vpack.c.b16 %v2137, %v2136
      %2154 = vmatprep.subr.bf16.mxu0 0
      %2155 = vmatpush1.bf16.msra.mxu0 %v2138
      %2156 = vmatprep.subr.bf16.mxu0 0
      %2157 = vmatpush1.bf16.msra.mxu0 %v2139
      %2158 = vmatprep.subr.bf16.mxu0 0
      %2159 = vmatpush1.bf16.msra.mxu0 %v2140
      %2160 = vmatprep.subr.bf16.mxu0 0
      %2161 = vmatpush1.bf16.msra.mxu0 %v2141
      %2162 = vmatprep.subr.bf16.mxu0 0
      %2163 = vmatpush1.bf16.msra.mxu0 %v2142
      %2164 = vmatprep.subr.bf16.mxu0 0
      %2165 = vmatpush1.bf16.msra.mxu0 %v2143
      %2166 = vmatprep.subr.bf16.mxu0 0
      %2167 = vmatpush1.bf16.msra.mxu0 %v2144
      %2168 = vmatprep.subr.bf16.mxu0 0
      %2169 = vmatpush1.bf16.msra.mxu0 %v2145
      %2170 = vmatprep.subr.bf16.mxu0 0
      %2171 = vmatpush1.bf16.msra.mxu0 0
      %2172 = vmatprep.subr.bf16.mxu0 0
      %2173 = vmatpush1.bf16.msra.mxu0 0
      %2174 = vmatprep.subr.bf16.mxu0 0
      %2175 = vmatpush1.bf16.msra.mxu0 0
      %2176 = vmatprep.subr.bf16.mxu0 0
      %2177 = vmatpush1.bf16.msra.mxu0 0
      %2178 = vmatprep.subr.bf16.mxu0 0
      %2179 = vmatpush1.bf16.msra.mxu0 0
      %2180 = vmatprep.subr.bf16.mxu0 0
      %2181 = vmatpush1.bf16.msra.mxu0 0
      %2182 = vmatprep.subr.bf16.mxu0 0
      %2183 = vmatpush1.bf16.msra.mxu0 0
      %2184 = vmatprep.subr.bf16.mxu0 0
      %2185 = vmatpush1.bf16.msra.mxu0 0
      %2186 = vmatprep.mubr.bf16.mxu0 0
      %2187 = vmatmul.mubr.bf16.gmra.mrb[0].mxu0 %v2075
      %v2188 = vpop.f32.mrb[0].mxu0
      %v2189 = vadd.f32 %v2104, %v2188
      %v2190 = vpop.f32.mrb[0].mxu0
      %v2191 = vpop.f32.mrb[0].mxu0
      %v2192 = vadd.f32 %v2104, %v2191
      %v2193 = vpop.f32.mrb[0].mxu0
      %2194 = vmatprep.mubr.bf16.mxu0 0
      %2195 = vmatmul.mubr.bf16.gmra.mrb[0].mxu0 %v2076
      %v2196 = vpop.f32.mrb[0].mxu0
      %v2197 = vadd.f32 %v2104, %v2196
      %v2198 = vpop.f32.mrb[0].mxu0
      %v2199 = vpop.f32.mrb[0].mxu0
      %v2200 = vadd.f32 %v2104, %v2199
      %v2201 = vpop.f32.mrb[0].mxu0
      %2202 = vmatprep.mubr.bf16.mxu0 0
      %2203 = vmatmul.mubr.bf16.gmra.mrb[0].mxu0 %v2077
      %v2204 = vpop.f32.mrb[0].mxu0
      %v2205 = vadd.f32 %v2104, %v2204
      %v2206 = vpop.f32.mrb[0].mxu0
      %v2207 = vpop.f32.mrb[0].mxu0
      %v2208 = vadd.f32 %v2104, %v2207
      %v2209 = vpop.f32.mrb[0].mxu0
      %2210 = vmatprep.mubr.bf16.mxu0 0
      %2211 = vmatmul.mubr.bf16.gmra.mrb[0].mxu0 %v2078
      %v2212 = vpop.f32.mrb[0].mxu0
      %v2213 = vadd.f32 %v2104, %v2212
      %v2214 = vpop.f32.mrb[0].mxu0
      %v2215 = vpop.f32.mrb[0].mxu0
      %v2216 = vadd.f32 %v2104, %v2215
      %v2217 = vpop.f32.mrb[0].mxu0
      %2218 = vmatprep.mubr.bf16.mxu0 0
      %2219 = vmatmul.mubr.bf16.gmra.mrb[0].mxu0 %v2079
      %v2220 = vpop.f32.mrb[0].mxu0
      %v2221 = vadd.f32 %v2104, %v2220
      %v2222 = vpop.f32.mrb[0].mxu0
      %v2223 = vpop.f32.mrb[0].mxu0
      %v2224 = vadd.f32 %v2104, %v2223
      %v2225 = vpop.f32.mrb[0].mxu0
      %2226 = vmatprep.mubr.bf16.mxu0 0
      %2227 = vmatmul.mubr.bf16.gmra.mrb[0].mxu0 %v2080
      %v2228 = vpop.f32.mrb[0].mxu0
      %v2229 = vadd.f32 %v2104, %v2228
      %v2230 = vpop.f32.mrb[0].mxu0
      %v2231 = vpop.f32.mrb[0].mxu0
      %v2232 = vadd.f32 %v2104, %v2231
      %v2233 = vpop.f32.mrb[0].mxu0
      %2234 = vmatprep.mubr.bf16.mxu0 0
      %2235 = vmatmul.mubr.bf16.gmra.mrb[0].mxu0 %v2081
      %v2236 = vpop.f32.mrb[0].mxu0
      %v2237 = vadd.f32 %v2104, %v2236
      %v2238 = vpop.f32.mrb[0].mxu0
      %v2239 = vpop.f32.mrb[0].mxu0
      %v2240 = vadd.f32 %v2104, %v2239
      %v2241 = vpop.f32.mrb[0].mxu0
      %2242 = vmatprep.mubr.bf16.mxu0 0
      %2243 = vmatmul.mubr.bf16.gmra.mrb[0].mxu0 %v2082
      %v2244 = vpop.f32.mrb[0].mxu0
      %v2245 = vadd.f32 %v2104, %v2244
      %v2246 = vpop.f32.mrb[0].mxu0
      %v2247 = vpop.f32.mrb[0].mxu0
      %v2248 = vadd.f32 %v2104, %v2247
      %v2249 = vpop.f32.mrb[0].mxu0
      %2250 = vdwg.mxu0
      %vm2251 = vcmask 64512
      %2252 = vst.msk [vmem:[%s334] sm:$0xff] %vm2251, %v2189
      %2253 = vst.msk [vmem:[%s334 + $0x8] sm:$0xff] %vm2251, %v2192
      %2254 = vst.msk [vmem:[%s334 + $0x10] sm:$0xff] %vm2251, %v2197
      %2255 = vst.msk [vmem:[%s334 + $0x18] sm:$0xff] %vm2251, %v2200
      %2256 = vst.msk [vmem:[%s334 + $0x20] sm:$0xff] %vm2251, %v2205
      %2257 = vst.msk [vmem:[%s334 + $0x28] sm:$0xff] %vm2251, %v2208
      %2258 = vst.msk [vmem:[%s334 + $0x30] sm:$0xff] %vm2251, %v2213
      %2259 = vst.msk [vmem:[%s334 + $0x38] sm:$0xff] %vm2251, %v2216
      %2260 = vst.msk [vmem:[%s334 + $0x40] sm:$0xff] %vm2251, %v2221
      %2261 = vst.msk [vmem:[%s334 + $0x48] sm:$0xff] %vm2251, %v2224
      %2262 = vst.msk [vmem:[%s334 + $0x50] sm:$0xff] %vm2251, %v2229
      %2263 = vst.msk [vmem:[%s334 + $0x58] sm:$0xff] %vm2251, %v2232
      %2264 = vst.msk [vmem:[%s334 + $0x60] sm:$0xff] %vm2251, %v2237
      %2265 = vst.msk [vmem:[%s334 + $0x68] sm:$0xff] %vm2251, %v2240
      %2266 = vst.msk [vmem:[%s334 + $0x70] sm:$0xff] %vm2251, %v2245
      %2267 = vst.msk [vmem:[%s334 + $0x78] sm:$0xff] %vm2251, %v2248
      %s2268 = smul.u32 16, %s20
      %p2269 = scmp.lt.s32.totalorder %s2268, 31
      %s2270 = scalar_select %p2269, %s2268, 31
      %s2271 = smul.addr %s2270, 8
      %s2272 = scalar_lea.vmem %s9, %s2271
      // Predicated region
      $region57: #{resnet_forward.1} parent=55 // pred_check
        %p2273 = pneg %p232
      $region58: #{resnet_forward.1} parent=55 // pred_check_branch
        %2275 = sbr.rel (%p2273) target = $region60
      $region59: #{resnet_forward.1} parent=55 // pred_region
        %s2276 = smul.u32 16, %s20
      $region60: #{resnet_forward.1} parent=55 // pred_fallthru
        _
    $region56: #{resnet_forward.1} parent=5 // pred_fallthru
      _
    %p2277 = scmp.le.s32.totalorder 2, %s15
    // Predicated region
    $region61: #{resnet_forward.1} parent=5 // pred_check
      %p2278 = pneg %p2277
    $region62: #{resnet_forward.1} parent=5 // pred_check_branch
      %2280 = sbr.rel (%p2278) target = $region64
    $region63: #{resnet_forward.1} parent=5 // pred_region
      %s2281 = ssub.s32 %s15, 2
      // Predicated region
      $region65: #{resnet_forward.1} parent=63 // pred_check
        %p2282 = pneg %p238
      $region66: #{resnet_forward.1} parent=63 // pred_check_branch
        %2284 = sbr.rel (%p2282) target = $region68
      $region67: #{resnet_forward.1} parent=63 // pred_region
        %s2285 = smul.u32 16, %s21
        %p2286 = scmp.lt.s32.totalorder %s2285, 31
        %s2287 = scalar_select %p2286, %s2285, 31
        %s2288 = smul.addr %s2287, 8
        %s2289 = scalar_lea.vmem %s9, %s2288
      $region68: #{resnet_forward.1} parent=63 // pred_fallthru
        _
    $region64: #{resnet_forward.1} parent=5 // pred_fallthru
      _
  $region6: #{resnet_forward.1} parent=0 // loop_footer
    %s19 = sadd.s32 1, %s15
  $region7: #{resnet_forward.1} parent=0 // loop_footer_branch
    %14 = sbr.rel target = $region3
  $region8: #{resnet_forward.1} parent=0 // loop_exit
    _

</llo_original>
